<compile_context>
chip_gen: v6e
topology: v6e:2x2x1
jax: 0.10.0
libtpu: 0.0.40
codegen_flags: <defaults>
</compile_context>

<pallas_src>
import functools

import jax
import jax.numpy as jnp
import numpy as np
from jax.experimental import pallas as pl
from jax.experimental.pallas import tpu as pltpu


# ----------------------------------------------------------------------------
# Host-side constant builders
# ----------------------------------------------------------------------------
def make_interp_matrix(n_out, n_in):
    """Row-interpolation matrix for bilinear upsample with align_corners=True."""
    A = np.zeros((n_out, n_in), dtype=np.float32)
    if n_out == 1 or n_in == 1:
        A[:, 0] = 1.0
        return A
    scale = (n_in - 1) / (n_out - 1)
    for i in range(n_out):
        src = i * scale
        i0 = min(int(np.floor(src)), n_in - 1)
        i1 = min(i0 + 1, n_in - 1)
        frac = src - i0
        A[i, i0] += 1.0 - frac
        A[i, i1] += frac
    return A


def make_upsample_pad_matrix_T(H1, W1, H2, W2, pad_top, pad_left):
    """[H1*W1, H2*W2] matrix M^T so that x_flat @ M^T == pad(upsample2x(x)) flat."""
    Ho, Wo = 2 * H1, 2 * W1
    Ah = make_interp_matrix(Ho, H1)
    Aw = make_interp_matrix(Wo, W1)
    Ah_p = np.zeros((H2, H1), np.float32)
    Aw_p = np.zeros((W2, W1), np.float32)
    Ah_p[pad_top:pad_top + Ho, :] = Ah
    Aw_p[pad_left:pad_left + Wo, :] = Aw
    M = np.kron(Ah_p, Aw_p)              # [H2*W2, H1*W1]
    return jnp.asarray(M.T)              # pre-transposed for the kernel


def make_conv_masks(H, W):
    """[9, H*W] validity masks for the 9 taps of a 3x3 'same' (zero-pad) conv."""
    m = np.zeros((9, H, W), np.float32)
    for dy in range(3):
        for dx in range(3):
            k = dy * 3 + dx
            m[k,
              max(0, 1 - dy):min(H, H + 1 - dy),
              max(0, 1 - dx):min(W, W + 1 - dx)] = 1.0
    return jnp.asarray(m.reshape(9, H * W))


# ----------------------------------------------------------------------------
# The fused kernel (one grid step per batch sample)
# ----------------------------------------------------------------------------
def fused_up_kernel(x1_ref, x2_ref, m_ref, mask_ref,
                    w1_ref, w2_ref, wr_ref,
                    s1_ref, t1_ref, s2_ref, t2_ref, br_ref,
                    o_ref, *, W, HW):
    masks = mask_ref[...]                                           # [9, HW]

    # Upsample + pad + channel-concat: x1/x2 arrive on disjoint (zero-padded)
    # channel rows, so the concat is a single lane-dense matmul + add.
    x1u = jnp.dot(x1_ref[0], m_ref[...],
                  preferred_element_type=jnp.float32)               # [Cp, HW]
    x_cat = x2_ref[0] + x1u                                         # [Cp, HW]

    def conv3x3(x_in, w_mat):
        # im2col: 9 lane-rolled + border-masked copies stacked on sublanes,
        # then one K = 9*C matmul on the MXU.
        taps = []
        for dy in range(3):
            for dx in range(3):
                k = dy * 3 + dx
                shift = (-((dy - 1) * W + (dx - 1))) % HW
                if shift == 0:
                    taps.append(x_in)                               # center tap
                else:
                    rolled = pltpu.roll(x_in, shift=shift, axis=1)
                    taps.append(rolled * masks[k:k + 1, :])
        im2col = jnp.concatenate(taps, axis=0)                      # [9*C, HW]
        return jnp.dot(w_mat, im2col,
                       preferred_element_type=jnp.float32)          # [Cout, HW]

    # conv1 -> BN1 -> ReLU
    y1 = jnp.maximum(conv3x3(x_cat, w1_ref[...]) * s1_ref[...] + t1_ref[...], 0.0)
    # conv2 -> BN2
    y2 = conv3x3(y1, w2_ref[...]) * s2_ref[...] + t2_ref[...]
    # residual 1x1 conv + add + ReLU
    res = jnp.dot(wr_ref[...], x_cat,
                  preferred_element_type=jnp.float32) + br_ref[...]
    o_ref[0] = jnp.maximum(y2 + res, 0.0).astype(o_ref.dtype)


# ----------------------------------------------------------------------------
# Parameter init (deterministic) + BN folding
# ----------------------------------------------------------------------------
def init_params(key, in_channels, out_channels):
    ks = jax.random.split(key, 14)
    p = {}
    p['w1'] = 0.1 * jax.random.normal(ks[0], (out_channels, in_channels, 3, 3), jnp.float32)
    p['b1'] = 0.1 * jax.random.normal(ks[1], (out_channels,), jnp.float32)
    p['w2'] = 0.1 * jax.random.normal(ks[2], (out_channels, out_channels, 3, 3), jnp.float32)
    p['b2'] = 0.1 * jax.random.normal(ks[3], (out_channels,), jnp.float32)
    p['wr'] = 0.1 * jax.random.normal(ks[4], (out_channels, in_channels, 1, 1), jnp.float32)
    p['br'] = 0.1 * jax.random.normal(ks[5], (out_channels,), jnp.float32)
    for i, tag in enumerate(('bn1', 'bn2')):
        base = 6 + 4 * i
        p[tag] = dict(
            gamma=1.0 + 0.1 * jax.random.normal(ks[base], (out_channels,), jnp.float32),
            beta=0.1 * jax.random.normal(ks[base + 1], (out_channels,), jnp.float32),
            mean=0.1 * jax.random.normal(ks[base + 2], (out_channels,), jnp.float32),
            var=jnp.abs(0.1 * jax.random.normal(ks[base + 3], (out_channels,), jnp.float32)) + 1.0,
        )
    return p


def fold_bn(conv_bias, bn, eps=1e-5):
    scale = bn['gamma'] / jnp.sqrt(bn['var'] + eps)
    shift = bn['beta'] + (conv_bias - bn['mean']) * scale
    return scale, shift


# ----------------------------------------------------------------------------
# Up.forward
# ----------------------------------------------------------------------------
def up_forward(x1, x2, params):
    """x1, x2 in NCHW float32; returns NCHW float32."""
    N, C1, H1, W1 = x1.shape
    _, C2, H, W = x2.shape
    Ho, Wo = 2 * H1, 2 * W1
    diffY, diffX = H - Ho, W - Wo
    Cin = C1 + C2
    Cout = params['w1'].shape[0]
    Cp = ((Cin + 7) // 8) * 8             # pad input channels to a sublane tile
    HW, H1W1 = H * W, H1 * W1
    # NOTE: Cout=8 here (multiple of 8) keeps the conv2 im2col concat aligned.

    m_t = make_upsample_pad_matrix_T(H1, W1, H, W, diffY // 2, diffX // 2)
    masks = make_conv_masks(H, W)

    # Channel-major inputs on disjoint padded channel rows:
    #   rows [0:C2]        <- x2 channels
    #   rows [C2:C2+C1]    <- x1 channels (pre-upsample)
    x2_cm = jnp.pad(x2.reshape(N, C2, HW), ((0, 0), (0, Cp - C2), (0, 0)))
    x1_cm = jnp.pad(x1.reshape(N, C1, H1W1), ((0, 0), (C2, Cp - C2 - C1), (0, 0)))

    # Weights: OIHW -> [Cout, 3, 3, Cin] -> pad Cin->Cp -> [Cout, 9*Cp] (im2col order)
    def pack_w(w_oihw, c_pad):
        co, ci = w_oihw.shape[0], w_oihw.shape[1]
        w = jnp.transpose(w_oihw, (0, 2, 3, 1))
        w = jnp.pad(w, ((0, 0), (0, 0), (0, 0), (0, c_pad - ci)))
        return w.reshape(co, 9 * c_pad)

    w1_mat = pack_w(params['w1'], Cp)                       # [Cout, 9*Cp]
    w2_mat = pack_w(params['w2'], Cout)                     # [Cout, 9*Cout]
    wr_mat = jnp.pad(params['wr'][:, :, 0, 0], ((0, 0), (0, Cp - Cin)))  # [Cout, Cp]

    s1, t1 = fold_bn(params['b1'], params['bn1'])
    s2, t2 = fold_bn(params['b2'], params['bn2'])

    kern = functools.partial(fused_up_kernel, W=W, HW=HW)
    bcast2 = lambda n: (0, 0)
    out = pl.pallas_call(
        kern,
        out_shape=jax.ShapeDtypeStruct((N, Cout, HW), jnp.float32),
        grid=(N,),
        in_specs=[
            pl.BlockSpec((1, Cp, H1W1), lambda n: (n, 0, 0)),   # x1 (channel-major)
            pl.BlockSpec((1, Cp, HW), lambda n: (n, 0, 0)),     # x2 (channel-major)
            pl.BlockSpec((H1W1, HW), bcast2),                   # upsample+pad matrix^T
            pl.BlockSpec((9, HW), bcast2),                      # conv border masks
            pl.BlockSpec((Cout, 9 * Cp), bcast2),               # conv1 weights (im2col)
            pl.BlockSpec((Cout, 9 * Cout), bcast2),             # conv2 weights (im2col)
            pl.BlockSpec((Cout, Cp), bcast2),                   # residual 1x1 weights
            pl.BlockSpec((Cout, 1), bcast2),                    # BN1 scale
            pl.BlockSpec((Cout, 1), bcast2),                    # BN1 shift (+b1)
            pl.BlockSpec((Cout, 1), bcast2),                    # BN2 scale
            pl.BlockSpec((Cout, 1), bcast2),                    # BN2 shift (+b2)
            pl.BlockSpec((Cout, 1), bcast2),                    # residual bias
        ],
        out_specs=pl.BlockSpec((1, Cout, HW), lambda n: (n, 0, 0)),
        compiler_params=pltpu.CompilerParams(dimension_semantics=("parallel",)),
    )(x1_cm, x2_cm, m_t, masks, w1_mat, w2_mat, wr_mat,
      s1.reshape(Cout, 1), t1.reshape(Cout, 1),
      s2.reshape(Cout, 1), t2.reshape(Cout, 1),
      params['br'].reshape(Cout, 1))

    return out.reshape(N, Cout, H, W)      # already NCHW (channel-major layout)


# ----------------------------------------------------------------------------
# Pure-JAX reference (for a sanity check)
# ----------------------------------------------------------------------------
def reference_forward(x1, x2, params):
    N, C, H, W = x1.shape
    Ah = jnp.asarray(make_interp_matrix(2 * H, H))
    Aw = jnp.asarray(make_interp_matrix(2 * W, W))
    x1u = jnp.einsum('oh,nchw,pw->ncop', Ah, x1, Aw)
    diffY = x2.shape[2] - x1u.shape[2]
    diffX = x2.shape[3] - x1u.shape[3]
    x1u = jnp.pad(x1u, ((0, 0), (0, 0),
                        (diffY // 2, diffY - diffY // 2),
                        (diffX // 2, diffX - diffX // 2)))
    x = jnp.concatenate([x2, x1u], axis=1)

    def conv(x_nchw, w_oihw, b):
        y = jax.lax.conv_general_dilated(
            x_nchw, w_oihw, window_strides=(1, 1),
            padding=[(w_oihw.shape[2] // 2,) * 2, (w_oihw.shape[3] // 2,) * 2],
            dimension_numbers=('NCHW', 'OIHW', 'NCHW'))
        return y + b[None, :, None, None]

    def bn(y, bnp, eps=1e-5):
        s = bnp['gamma'] / jnp.sqrt(bnp['var'] + eps)
        return (y - bnp['mean'][None, :, None, None]) * s[None, :, None, None] \
            + bnp['beta'][None, :, None, None]

    res = conv(x, params['wr'], params['br'])
    h = jax.nn.relu(bn(conv(x, params['w1'], params['b1']), params['bn1']))
    h = bn(conv(h, params['w2'], params['b2']), params['bn2'])
    return jax.nn.relu(h + res)


if __name__ == "__main__":
    key = jax.random.PRNGKey(0)
    k1, k2, kp = jax.random.split(key, 3)

    # Up(in_channels=4, out_channels=8, bilinear=True)
    # x1: decoder feature [2, 2, 8, 8]  -> upsampled to 16x16
    # x2: skip connection [2, 2, 16, 16]; concat -> 4 channels
    in_channels, out_channels = 4, 8
    x1 = jax.random.normal(k1, (2, 2, 8, 8), jnp.float32)
    x2 = jax.random.normal(k2, (2, 2, 16, 16), jnp.float32)
    params = init_params(kp, in_channels, out_channels)

    out = jax.block_until_ready(up_forward(x1, x2, params))
    ref = jax.block_until_ready(reference_forward(x1, x2, params))

    assert out.shape == (2, out_channels, 16, 16), out.shape
    np.testing.assert_allclose(np.asarray(out), np.asarray(ref), rtol=1e-4, atol=1e-4)

    print("KERNEL_OK")
</pallas_src>

<mosaic_0001>
module attributes {stable_mosaic.version = 11 : i64} {
  func.func @fused_up_kernel(%arg0: i32, %arg1: memref<1x8x64xf32, #tpu.memory_space<vmem>>, %arg2: memref<1x8x256xf32, #tpu.memory_space<vmem>>, %arg3: memref<64x256xf32, #tpu.memory_space<vmem>>, %arg4: memref<9x256xf32, #tpu.memory_space<vmem>>, %arg5: memref<8x72xf32, #tpu.memory_space<vmem>>, %arg6: memref<8x72xf32, #tpu.memory_space<vmem>>, %arg7: memref<8x8xf32, #tpu.memory_space<vmem>>, %arg8: memref<8x1xf32, #tpu.memory_space<vmem>>, %arg9: memref<8x1xf32, #tpu.memory_space<vmem>>, %arg10: memref<8x1xf32, #tpu.memory_space<vmem>>, %arg11: memref<8x1xf32, #tpu.memory_space<vmem>>, %arg12: memref<8x1xf32, #tpu.memory_space<vmem>>, %arg13: memref<1x8x256xf32, #tpu.memory_space<vmem>>) attributes {dimension_semantics = [#tpu.dimension_semantics<parallel>], iteration_bounds = array<i64: 2>, scalar_prefetch = 0 : i64, scratch_operands = 0 : i64, tpu.core_type = #tpu.core_type<tc>, window_params = [{transform_indices = @transform_0, window_bounds = array<i64: 1, 8, 64>}, {transform_indices = @transform_1, window_bounds = array<i64: 1, 8, 256>}, {pipeline_mode = #tpu.pipeline_mode<synchronous>, transform_indices = @transform_2, window_bounds = array<i64: 64, 256>}, {pipeline_mode = #tpu.pipeline_mode<synchronous>, transform_indices = @transform_3, window_bounds = array<i64: 9, 256>}, {pipeline_mode = #tpu.pipeline_mode<synchronous>, transform_indices = @transform_4, window_bounds = array<i64: 8, 72>}, {pipeline_mode = #tpu.pipeline_mode<synchronous>, transform_indices = @transform_5, window_bounds = array<i64: 8, 72>}, {pipeline_mode = #tpu.pipeline_mode<synchronous>, transform_indices = @transform_6, window_bounds = array<i64: 8, 8>}, {pipeline_mode = #tpu.pipeline_mode<synchronous>, transform_indices = @transform_7, window_bounds = array<i64: 8, 1>}, {pipeline_mode = #tpu.pipeline_mode<synchronous>, transform_indices = @transform_8, window_bounds = array<i64: 8, 1>}, {pipeline_mode = #tpu.pipeline_mode<synchronous>, transform_indices = @transform_9, window_bounds = array<i64: 8, 1>}, {pipeline_mode = #tpu.pipeline_mode<synchronous>, transform_indices = @transform_10, window_bounds = array<i64: 8, 1>}, {pipeline_mode = #tpu.pipeline_mode<synchronous>, transform_indices = @transform_11, window_bounds = array<i64: 8, 1>}, {transform_indices = @transform_12, window_bounds = array<i64: 1, 8, 256>}]} {
    %c0 = arith.constant 0 : index
    %c0_0 = arith.constant 0 : index
    %0 = vector.load %arg4[%c0, %c0_0] : memref<9x256xf32, #tpu.memory_space<vmem>>, vector<9x256xf32>
    %c0_1 = arith.constant 0 : index
    %c0_2 = arith.constant 0 : index
    %c0_3 = arith.constant 0 : index
    %1 = vector.load %arg1[%c0_1, %c0_2, %c0_3] : memref<1x8x64xf32, #tpu.memory_space<vmem>>, vector<1x8x64xf32>
    %2 = vector.shape_cast %1 : vector<1x8x64xf32> to vector<8x64xf32>
    %c0_4 = arith.constant 0 : index
    %c0_5 = arith.constant 0 : index
    %3 = vector.load %arg3[%c0_4, %c0_5] : memref<64x256xf32, #tpu.memory_space<vmem>>, vector<64x256xf32>
    %cst = arith.constant dense<0.000000e+00> : vector<8x256xf32>
    %4 = tpu.matmul %2, %3, %cst {dimension_numbers = #tpu.dot_dimension_numbers<[1], [0], [0], [1], [0, 0, 1, 1], [], []>} : vector<8x64xf32>, vector<64x256xf32>, vector<8x256xf32> -> vector<8x256xf32>
    %c0_6 = arith.constant 0 : index
    %c0_7 = arith.constant 0 : index
    %c0_8 = arith.constant 0 : index
    %5 = vector.load %arg2[%c0_6, %c0_7, %c0_8] : memref<1x8x256xf32, #tpu.memory_space<vmem>>, vector<1x8x256xf32>
    %6 = vector.shape_cast %5 : vector<1x8x256xf32> to vector<8x256xf32>
    %7 = arith.addf %6, %4 : vector<8x256xf32>
    %c0_9 = arith.constant 0 : index
    %c0_10 = arith.constant 0 : index
    %8 = vector.load %arg5[%c0_9, %c0_10] : memref<8x72xf32, #tpu.memory_space<vmem>>, vector<8x72xf32>
    %c17_i32 = arith.constant 17 : i32
    %9 = tpu.dynamic_rotate %7 by %c17_i32 dim 1 : vector<8x256xf32>, i32 -> vector<8x256xf32>
    %10 = vector.extract_strided_slice %0 {offsets = [0, 0], sizes = [1, 256], strides = [1, 1]} : vector<9x256xf32> to vector<1x256xf32>
    %11 = vector.broadcast %10 : vector<1x256xf32> to vector<8x256xf32>
    %12 = arith.mulf %9, %11 : vector<8x256xf32>
    %c16_i32 = arith.constant 16 : i32
    %13 = tpu.dynamic_rotate %7 by %c16_i32 dim 1 : vector<8x256xf32>, i32 -> vector<8x256xf32>
    %14 = vector.extract_strided_slice %0 {offsets = [1, 0], sizes = [1, 256], strides = [1, 1]} : vector<9x256xf32> to vector<1x256xf32>
    %15 = vector.broadcast %14 : vector<1x256xf32> to vector<8x256xf32>
    %16 = arith.mulf %13, %15 : vector<8x256xf32>
    %c15_i32 = arith.constant 15 : i32
    %17 = tpu.dynamic_rotate %7 by %c15_i32 dim 1 : vector<8x256xf32>, i32 -> vector<8x256xf32>
    %18 = vector.extract_strided_slice %0 {offsets = [2, 0], sizes = [1, 256], strides = [1, 1]} : vector<9x256xf32> to vector<1x256xf32>
    %19 = vector.broadcast %18 : vector<1x256xf32> to vector<8x256xf32>
    %20 = arith.mulf %17, %19 : vector<8x256xf32>
    %c1_i32 = arith.constant 1 : i32
    %21 = tpu.dynamic_rotate %7 by %c1_i32 dim 1 : vector<8x256xf32>, i32 -> vector<8x256xf32>
    %22 = vector.extract_strided_slice %0 {offsets = [3, 0], sizes = [1, 256], strides = [1, 1]} : vector<9x256xf32> to vector<1x256xf32>
    %23 = vector.broadcast %22 : vector<1x256xf32> to vector<8x256xf32>
    %24 = arith.mulf %21, %23 : vector<8x256xf32>
    %c255_i32 = arith.constant 255 : i32
    %25 = tpu.dynamic_rotate %7 by %c255_i32 dim 1 : vector<8x256xf32>, i32 -> vector<8x256xf32>
    %26 = vector.extract_strided_slice %0 {offsets = [5, 0], sizes = [1, 256], strides = [1, 1]} : vector<9x256xf32> to vector<1x256xf32>
    %27 = vector.broadcast %26 : vector<1x256xf32> to vector<8x256xf32>
    %28 = arith.mulf %25, %27 : vector<8x256xf32>
    %c241_i32 = arith.constant 241 : i32
    %29 = tpu.dynamic_rotate %7 by %c241_i32 dim 1 : vector<8x256xf32>, i32 -> vector<8x256xf32>
    %30 = vector.extract_strided_slice %0 {offsets = [6, 0], sizes = [1, 256], strides = [1, 1]} : vector<9x256xf32> to vector<1x256xf32>
    %31 = vector.broadcast %30 : vector<1x256xf32> to vector<8x256xf32>
    %32 = arith.mulf %29, %31 : vector<8x256xf32>
    %c240_i32 = arith.constant 240 : i32
    %33 = tpu.dynamic_rotate %7 by %c240_i32 dim 1 : vector<8x256xf32>, i32 -> vector<8x256xf32>
    %34 = vector.extract_strided_slice %0 {offsets = [7, 0], sizes = [1, 256], strides = [1, 1]} : vector<9x256xf32> to vector<1x256xf32>
    %35 = vector.broadcast %34 : vector<1x256xf32> to vector<8x256xf32>
    %36 = arith.mulf %33, %35 : vector<8x256xf32>
    %c239_i32 = arith.constant 239 : i32
    %37 = tpu.dynamic_rotate %7 by %c239_i32 dim 1 : vector<8x256xf32>, i32 -> vector<8x256xf32>
    %38 = vector.extract_strided_slice %0 {offsets = [8, 0], sizes = [1, 256], strides = [1, 1]} : vector<9x256xf32> to vector<1x256xf32>
    %39 = vector.broadcast %38 : vector<1x256xf32> to vector<8x256xf32>
    %40 = arith.mulf %37, %39 : vector<8x256xf32>
    %41 = tpu.concatenate %12, %16, %20, %24, %7, %28, %32, %36, %40 in 0 : vector<8x256xf32>, vector<8x256xf32>, vector<8x256xf32>, vector<8x256xf32>, vector<8x256xf32>, vector<8x256xf32>, vector<8x256xf32>, vector<8x256xf32>, vector<8x256xf32> -> vector<72x256xf32>
    %cst_11 = arith.constant dense<0.000000e+00> : vector<8x256xf32>
    %42 = tpu.matmul %8, %41, %cst_11 {dimension_numbers = #tpu.dot_dimension_numbers<[1], [0], [0], [1], [0, 0, 1, 1], [], []>} : vector<8x72xf32>, vector<72x256xf32>, vector<8x256xf32> -> vector<8x256xf32>
    %c0_12 = arith.constant 0 : index
    %c0_13 = arith.constant 0 : index
    %43 = vector.load %arg8[%c0_12, %c0_13] : memref<8x1xf32, #tpu.memory_space<vmem>>, vector<8x1xf32>
    %44 = vector.broadcast %43 : vector<8x1xf32> to vector<8x256xf32>
    %45 = arith.mulf %42, %44 : vector<8x256xf32>
    %c0_14 = arith.constant 0 : index
    %c0_15 = arith.constant 0 : index
    %46 = vector.load %arg9[%c0_14, %c0_15] : memref<8x1xf32, #tpu.memory_space<vmem>>, vector<8x1xf32>
    %47 = vector.broadcast %46 : vector<8x1xf32> to vector<8x256xf32>
    %48 = arith.addf %45, %47 : vector<8x256xf32>
    %cst_16 = arith.constant 0.000000e+00 : f32
    %49 = vector.broadcast %cst_16 : f32 to vector<8x256xf32>
    %50 = arith.maximumf %48, %49 : vector<8x256xf32>
    %c0_17 = arith.constant 0 : index
    %c0_18 = arith.constant 0 : index
    %51 = vector.load %arg6[%c0_17, %c0_18] : memref<8x72xf32, #tpu.memory_space<vmem>>, vector<8x72xf32>
    %c17_i32_19 = arith.constant 17 : i32
    %52 = tpu.dynamic_rotate %50 by %c17_i32_19 dim 1 : vector<8x256xf32>, i32 -> vector<8x256xf32>
    %53 = vector.extract_strided_slice %0 {offsets = [0, 0], sizes = [1, 256], strides = [1, 1]} : vector<9x256xf32> to vector<1x256xf32>
    %54 = vector.broadcast %53 : vector<1x256xf32> to vector<8x256xf32>
    %55 = arith.mulf %52, %54 : vector<8x256xf32>
    %c16_i32_20 = arith.constant 16 : i32
    %56 = tpu.dynamic_rotate %50 by %c16_i32_20 dim 1 : vector<8x256xf32>, i32 -> vector<8x256xf32>
    %57 = vector.extract_strided_slice %0 {offsets = [1, 0], sizes = [1, 256], strides = [1, 1]} : vector<9x256xf32> to vector<1x256xf32>
    %58 = vector.broadcast %57 : vector<1x256xf32> to vector<8x256xf32>
    %59 = arith.mulf %56, %58 : vector<8x256xf32>
    %c15_i32_21 = arith.constant 15 : i32
    %60 = tpu.dynamic_rotate %50 by %c15_i32_21 dim 1 : vector<8x256xf32>, i32 -> vector<8x256xf32>
    %61 = vector.extract_strided_slice %0 {offsets = [2, 0], sizes = [1, 256], strides = [1, 1]} : vector<9x256xf32> to vector<1x256xf32>
    %62 = vector.broadcast %61 : vector<1x256xf32> to vector<8x256xf32>
    %63 = arith.mulf %60, %62 : vector<8x256xf32>
    %c1_i32_22 = arith.constant 1 : i32
    %64 = tpu.dynamic_rotate %50 by %c1_i32_22 dim 1 : vector<8x256xf32>, i32 -> vector<8x256xf32>
    %65 = vector.extract_strided_slice %0 {offsets = [3, 0], sizes = [1, 256], strides = [1, 1]} : vector<9x256xf32> to vector<1x256xf32>
    %66 = vector.broadcast %65 : vector<1x256xf32> to vector<8x256xf32>
    %67 = arith.mulf %64, %66 : vector<8x256xf32>
    %c255_i32_23 = arith.constant 255 : i32
    %68 = tpu.dynamic_rotate %50 by %c255_i32_23 dim 1 : vector<8x256xf32>, i32 -> vector<8x256xf32>
    %69 = vector.extract_strided_slice %0 {offsets = [5, 0], sizes = [1, 256], strides = [1, 1]} : vector<9x256xf32> to vector<1x256xf32>
    %70 = vector.broadcast %69 : vector<1x256xf32> to vector<8x256xf32>
    %71 = arith.mulf %68, %70 : vector<8x256xf32>
    %c241_i32_24 = arith.constant 241 : i32
    %72 = tpu.dynamic_rotate %50 by %c241_i32_24 dim 1 : vector<8x256xf32>, i32 -> vector<8x256xf32>
    %73 = vector.extract_strided_slice %0 {offsets = [6, 0], sizes = [1, 256], strides = [1, 1]} : vector<9x256xf32> to vector<1x256xf32>
    %74 = vector.broadcast %73 : vector<1x256xf32> to vector<8x256xf32>
    %75 = arith.mulf %72, %74 : vector<8x256xf32>
    %c240_i32_25 = arith.constant 240 : i32
    %76 = tpu.dynamic_rotate %50 by %c240_i32_25 dim 1 : vector<8x256xf32>, i32 -> vector<8x256xf32>
    %77 = vector.extract_strided_slice %0 {offsets = [7, 0], sizes = [1, 256], strides = [1, 1]} : vector<9x256xf32> to vector<1x256xf32>
    %78 = vector.broadcast %77 : vector<1x256xf32> to vector<8x256xf32>
    %79 = arith.mulf %76, %78 : vector<8x256xf32>
    %c239_i32_26 = arith.constant 239 : i32
    %80 = tpu.dynamic_rotate %50 by %c239_i32_26 dim 1 : vector<8x256xf32>, i32 -> vector<8x256xf32>
    %81 = vector.extract_strided_slice %0 {offsets = [8, 0], sizes = [1, 256], strides = [1, 1]} : vector<9x256xf32> to vector<1x256xf32>
    %82 = vector.broadcast %81 : vector<1x256xf32> to vector<8x256xf32>
    %83 = arith.mulf %80, %82 : vector<8x256xf32>
    %84 = tpu.concatenate %55, %59, %63, %67, %50, %71, %75, %79, %83 in 0 : vector<8x256xf32>, vector<8x256xf32>, vector<8x256xf32>, vector<8x256xf32>, vector<8x256xf32>, vector<8x256xf32>, vector<8x256xf32>, vector<8x256xf32>, vector<8x256xf32> -> vector<72x256xf32>
    %cst_27 = arith.constant dense<0.000000e+00> : vector<8x256xf32>
    %85 = tpu.matmul %51, %84, %cst_27 {dimension_numbers = #tpu.dot_dimension_numbers<[1], [0], [0], [1], [0, 0, 1, 1], [], []>} : vector<8x72xf32>, vector<72x256xf32>, vector<8x256xf32> -> vector<8x256xf32>
    %c0_28 = arith.constant 0 : index
    %c0_29 = arith.constant 0 : index
    %86 = vector.load %arg10[%c0_28, %c0_29] : memref<8x1xf32, #tpu.memory_space<vmem>>, vector<8x1xf32>
    %87 = vector.broadcast %86 : vector<8x1xf32> to vector<8x256xf32>
    %88 = arith.mulf %85, %87 : vector<8x256xf32>
    %c0_30 = arith.constant 0 : index
    %c0_31 = arith.constant 0 : index
    %89 = vector.load %arg11[%c0_30, %c0_31] : memref<8x1xf32, #tpu.memory_space<vmem>>, vector<8x1xf32>
    %90 = vector.broadcast %89 : vector<8x1xf32> to vector<8x256xf32>
    %91 = arith.addf %88, %90 : vector<8x256xf32>
    %c0_32 = arith.constant 0 : index
    %c0_33 = arith.constant 0 : index
    %92 = vector.load %arg7[%c0_32, %c0_33] : memref<8x8xf32, #tpu.memory_space<vmem>>, vector<8x8xf32>
    %cst_34 = arith.constant dense<0.000000e+00> : vector<8x256xf32>
    %93 = tpu.matmul %92, %7, %cst_34 {dimension_numbers = #tpu.dot_dimension_numbers<[1], [0], [0], [1], [0, 0, 1, 1], [], []>} : vector<8x8xf32>, vector<8x256xf32>, vector<8x256xf32> -> vector<8x256xf32>
    %c0_35 = arith.constant 0 : index
    %c0_36 = arith.constant 0 : index
    %94 = vector.load %arg12[%c0_35, %c0_36] : memref<8x1xf32, #tpu.memory_space<vmem>>, vector<8x1xf32>
    %95 = vector.broadcast %94 : vector<8x1xf32> to vector<8x256xf32>
    %96 = arith.addf %93, %95 : vector<8x256xf32>
    %97 = arith.addf %91, %96 : vector<8x256xf32>
    %cst_37 = arith.constant 0.000000e+00 : f32
    %98 = vector.broadcast %cst_37 : f32 to vector<8x256xf32>
    %99 = arith.maximumf %97, %98 : vector<8x256xf32>
    %c0_38 = arith.constant 0 : index
    %c0_39 = arith.constant 0 : index
    %c0_40 = arith.constant 0 : index
    %100 = vector.load %arg13[%c0_38, %c0_39, %c0_40] : memref<1x8x256xf32, #tpu.memory_space<vmem>>, vector<1x8x256xf32>
    %101 = vector.shape_cast %100 : vector<1x8x256xf32> to vector<8x256xf32>
    %102 = vector.shape_cast %99 : vector<8x256xf32> to vector<1x8x256xf32>
    tpu.vector_store %arg13[%c0_38, %c0_39, %c0_40], %102 {strides = array<i32>} : memref<1x8x256xf32, #tpu.memory_space<vmem>>, vector<1x8x256xf32>,
    return
  }
  func.func @transform_0(%arg0: i32) -> (i32, i32, i32) {
    %c0_i32 = arith.constant 0 : i32
    %c0_i32_0 = arith.constant 0 : i32
    %c0_i32_1 = arith.constant 0 : i32
    return %arg0, %c0_i32, %c0_i32_0 : i32, i32, i32
  }
  func.func @transform_1(%arg0: i32) -> (i32, i32, i32) {
    %c0_i32 = arith.constant 0 : i32
    %c0_i32_0 = arith.constant 0 : i32
    %c0_i32_1 = arith.constant 0 : i32
    return %arg0, %c0_i32, %c0_i32_0 : i32, i32, i32
  }
  func.func @transform_2(%arg0: i32) -> (i32, i32) {
    %c0_i32 = arith.constant 0 : i32
    %c0_i32_0 = arith.constant 0 : i32
    %c0_i32_1 = arith.constant 0 : i32
    return %c0_i32, %c0_i32_0 : i32, i32
  }
  func.func @transform_3(%arg0: i32) -> (i32, i32) {
    %c0_i32 = arith.constant 0 : i32
    %c0_i32_0 = arith.constant 0 : i32
    %c0_i32_1 = arith.constant 0 : i32
    return %c0_i32, %c0_i32_0 : i32, i32
  }
  func.func @transform_4(%arg0: i32) -> (i32, i32) {
    %c0_i32 = arith.constant 0 : i32
    %c0_i32_0 = arith.constant 0 : i32
    %c0_i32_1 = arith.constant 0 : i32
    return %c0_i32, %c0_i32_0 : i32, i32
  }
  func.func @transform_5(%arg0: i32) -> (i32, i32) {
    %c0_i32 = arith.constant 0 : i32
    %c0_i32_0 = arith.constant 0 : i32
    %c0_i32_1 = arith.constant 0 : i32
    return %c0_i32, %c0_i32_0 : i32, i32
  }
  func.func @transform_6(%arg0: i32) -> (i32, i32) {
    %c0_i32 = arith.constant 0 : i32
    %c0_i32_0 = arith.constant 0 : i32
    %c0_i32_1 = arith.constant 0 : i32
    return %c0_i32, %c0_i32_0 : i32, i32
  }
  func.func @transform_7(%arg0: i32) -> (i32, i32) {
    %c0_i32 = arith.constant 0 : i32
    %c0_i32_0 = arith.constant 0 : i32
    %c0_i32_1 = arith.constant 0 : i32
    return %c0_i32, %c0_i32_0 : i32, i32
  }
  func.func @transform_8(%arg0: i32) -> (i32, i32) {
    %c0_i32 = arith.constant 0 : i32
    %c0_i32_0 = arith.constant 0 : i32
    %c0_i32_1 = arith.constant 0 : i32
    return %c0_i32, %c0_i32_0 : i32, i32
  }
  func.func @transform_9(%arg0: i32) -> (i32, i32) {
    %c0_i32 = arith.constant 0 : i32
    %c0_i32_0 = arith.constant 0 : i32
    %c0_i32_1 = arith.constant 0 : i32
    return %c0_i32, %c0_i32_0 : i32, i32
  }
  func.func @transform_10(%arg0: i32) -> (i32, i32) {
    %c0_i32 = arith.constant 0 : i32
    %c0_i32_0 = arith.constant 0 : i32
    %c0_i32_1 = arith.constant 0 : i32
    return %c0_i32, %c0_i32_0 : i32, i32
  }
  func.func @transform_11(%arg0: i32) -> (i32, i32) {
    %c0_i32 = arith.constant 0 : i32
    %c0_i32_0 = arith.constant 0 : i32
    %c0_i32_1 = arith.constant 0 : i32
    return %c0_i32, %c0_i32_0 : i32, i32
  }
  func.func @transform_12(%arg0: i32) -> (i32, i32, i32) {
    %c0_i32 = arith.constant 0 : i32
    %c0_i32_0 = arith.constant 0 : i32
    %c0_i32_1 = arith.constant 0 : i32
    return %arg0, %c0_i32, %c0_i32_0 : i32, i32, i32
  }
}

</mosaic_0001>

<llo_original>
// kernel: tpu_custom_call.1
$region0: #{tpu_custom_call.1}
  #allocation0 [shape = 'u32[]', space=smem, size = 0x4, offset = 0x4, fixed_abs, tag = 'smem constant byte address 0x4 - core index']
  #allocation1 [shape = 'u32[144,128]{1,0:T(1,128)}', space=vmem, size = 0x12000, scoped, tag = 'internal scratch']
  %s0 = inlined_call_operand.hbm [shape: f32[2,8,64], index: 0, kind: input, shape index: {}]
  %s1 = inlined_call_operand.vmem [shape: f32[2,8,256], index: 1, kind: input, shape index: {}]
  %s2 = inlined_call_operand.hbm [shape: f32[64,256], index: 2, kind: input, shape index: {}]
  %s3 = inlined_call_operand.hbm [shape: f32[9,256], index: 3, kind: input, shape index: {}]
  %s4 = inlined_call_operand.vmem [shape: f32[8,72], index: 4, kind: input, shape index: {}]
  %s5 = inlined_call_operand.vmem [shape: f32[8,72], index: 5, kind: input, shape index: {}]
  %s6 = inlined_call_operand.hbm [shape: f32[8,8], index: 6, kind: input, shape index: {}]
  %s7 = inlined_call_operand.vmem [shape: f32[8,1], index: 7, kind: input, shape index: {}]
  %s8 = inlined_call_operand.vmem [shape: f32[8,1], index: 8, kind: input, shape index: {}]
  %s9 = inlined_call_operand.vmem [shape: f32[8,1], index: 9, kind: input, shape index: {}]
  %s10 = inlined_call_operand.vmem [shape: f32[8,1], index: 10, kind: input, shape index: {}]
  %s11 = inlined_call_operand.vmem [shape: f32[8,1], index: 11, kind: input, shape index: {}]
  %s12 = inlined_call_operand.hbm [shape: f32[2,8,256], index: 12, kind: output, shape index: {}]
  %s13 = sld [smem:[#allocation0]]
  $region97: #{tpu_custom_call.1} parent=0
    _
  %s15 = ssub.s32 1, %s13
  %s16 = scalar_select 0, %s15, %s13
  $region1: #{tpu_custom_call.1} parent=0
    #allocation2 [shape = 'u8[8192]{0}', space=vmem, size = 0x2000, scoped, tag = 'input window, operand 0']
    #allocation3 [shape = 's32[2]{0}', space=sflag, size = 0x8, scoped, tag = 'scoped memory for tpu_custom_call.1']
    #allocation4 [shape = 's32[2]{0}', space=sflag, size = 0x8, scoped, tag = 'scoped memory for tpu_custom_call.1']
    #allocation5 [shape = 'u8[65536]{0}', space=vmem, size = 0x10000, scoped, tag = 'input window, operand 2, single buffered']
    #allocation6 [shape = 's32[1]{0}', space=sflag, size = 0x4, scoped, tag = 'scoped memory for tpu_custom_call.1']
    #allocation7 [shape = 'u8[16384]{0}', space=vmem, size = 0x4000, scoped, tag = 'input window, operand 3, single buffered']
    #allocation8 [shape = 'u8[4096]{0}', space=vmem, size = 0x1000, scoped, tag = 'input window, operand 6, single buffered']
    #allocation9 [shape = 's32[1]{0}', space=sflag, size = 0x4, scoped, tag = 'scoped memory for tpu_custom_call.1']
    #allocation10 [shape = 'u8[16384]{0}', space=vmem, size = 0x4000, scoped, tag = 'output window, operand 0']
    %17 = vsyncpa [#allocation3], 0
    %s18 = scalar_lea.sflag [#allocation3], 1
    %19 = vsyncpa %s18, 0
    %20 = vsyncpa [#allocation6], 0
    %21 = vsyncpa [#allocation9], 0
    %22 = vsyncpa [#allocation4], 0
    %s23 = scalar_lea.sflag [#allocation4], 1
    %24 = vsyncpa %s23, 0
    loop: start=0, step=1, limit=4
    $region2: #{tpu_custom_call.1} parent=1 // loop_pre_header
      _
    $region3: #{tpu_custom_call.1} parent=1 // loop_header
      %s26 = sphi 0, %s30
      %p27 = scmp.ge.s32.totalorder %s26, 4
      %s36 = sphi 0, %s38
      %s39 = sphi 0, %s36
      %s40 = sphi 0, %s39
      %s56 = sphi 0, %s40
      %s62 = sphi 0, %s64
      %s65 = sphi 0, %s62
      %s66 = sphi 0, %s65
      %s82 = sphi 0, %s66
      %s86 = sphi 0, %s86
      %s88 = sphi 0, %s86
      %s89 = sphi 0, %s88
      %s103 = sphi 0, %s89
      %s107 = sphi 0, %s107
      %s109 = sphi 0, %s107
      %s110 = sphi 0, %s109
      %s124 = sphi 0, %s110
      %s128 = sphi 0, %s128
      %s130 = sphi 0, %s128
      %s131 = sphi 0, %s130
      %s145 = sphi 0, %s131
      %s149 = sphi 0, %s149
      %s151 = sphi 0, %s149
      %s152 = sphi 0, %s151
      %s166 = sphi 0, %s152
      %s170 = sphi 0, %s170
      %s172 = sphi 0, %s170
      %s173 = sphi 0, %s172
      %s187 = sphi 0, %s173
      %s191 = sphi 0, %s191
      %s193 = sphi 0, %s191
      %s194 = sphi 0, %s193
      %s208 = sphi 0, %s194
      %s212 = sphi 0, %s212
      %s214 = sphi 0, %s212
      %s215 = sphi 0, %s214
      %s229 = sphi 0, %s215
      %s233 = sphi 0, %s233
      %s235 = sphi 0, %s233
      %s236 = sphi 0, %s235
      %s250 = sphi 0, %s236
      %s254 = sphi 0, %s254
      %s256 = sphi 0, %s254
      %s257 = sphi 0, %s256
      %s271 = sphi 0, %s257
      %s275 = sphi 0, %s275
      %s277 = sphi 0, %s275
      %s278 = sphi 0, %s277
      %s292 = sphi 0, %s278
      %s298 = sphi 0, %s300
      %s301 = sphi 0, %s298
      %s302 = sphi 0, %s301
      %s318 = sphi 0, %s302
    $region4: #{tpu_custom_call.1} parent=1 // loop_header_branch
      %29 = sbr.rel (%p27) target = $region8
    $region5: #{tpu_custom_call.1} parent=1 // loop_body
      %s31 = ssub.s32 %s26, 1
      %s32 = ssub.s32 %s26, 2
      %s33 = sadd.s32 %s26, 1
      %s34 = ssub.s32 %s26, %s33
      %p35 = scmp.eq.s32.totalorder %s34, 0
      %s37 = sadd.s32 %s36, 1
      %s38 = scalar_select %p35, %s36, %s37
      %p41 = pneg %p35
      %p42 = scmp.eq.s32.totalorder %s26, 1
      %p43 = por %p41, %p42
      %p44 = scmp.ne.s32.totalorder %s36, %s39
      %p45 = scmp.eq.s32.totalorder %s26, 0
      %p46 = por %p44, %p45
      %p47 = scmp.ne.s32.totalorder %s36, %s39
      %p48 = scmp.eq.s32.totalorder %s31, 1
      %p49 = por %p47, %p48
      %p50 = scmp.ne.s32.totalorder %s39, %s40
      %p51 = scmp.eq.s32.totalorder %s31, 0
      %p52 = por %p50, %p51
      %p53 = scmp.ne.s32.totalorder %s39, %s40
      %p54 = scmp.eq.s32.totalorder %s32, 1
      %p55 = por %p53, %p54
      %p57 = scmp.ne.s32.totalorder %s40, %s56
      %p58 = scmp.eq.s32.totalorder %s32, 0
      %p59 = por %p57, %p58
      %s60 = ssub.s32 %s26, %s33
      %p61 = scmp.eq.s32.totalorder %s60, 0
      %s63 = sadd.s32 %s62, 1
      %s64 = scalar_select %p61, %s62, %s63
      %p67 = pneg %p61
      %p68 = scmp.eq.s32.totalorder %s26, 1
      %p69 = por %p67, %p68
      %p70 = scmp.ne.s32.totalorder %s62, %s65
      %p71 = scmp.eq.s32.totalorder %s26, 0
      %p72 = por %p70, %p71
      %p73 = scmp.ne.s32.totalorder %s62, %s65
      %p74 = scmp.eq.s32.totalorder %s31, 1
      %p75 = por %p73, %p74
      %p76 = scmp.ne.s32.totalorder %s65, %s66
      %p77 = scmp.eq.s32.totalorder %s31, 0
      %p78 = por %p76, %p77
      %p79 = scmp.ne.s32.totalorder %s65, %s66
      %p80 = scmp.eq.s32.totalorder %s32, 1
      %p81 = por %p79, %p80
      %p83 = scmp.ne.s32.totalorder %s66, %s82
      %p84 = scmp.eq.s32.totalorder %s32, 0
      %p85 = por %p83, %p84
      %s87 = sadd.s32 %s86, 1
      %p90 = scmp.eq.s32.totalorder %s26, 1
      %p91 = scmp.ne.s32.totalorder %s86, %s88
      %p92 = scmp.eq.s32.totalorder %s26, 0
      %p93 = por %p91, %p92
      %p94 = scmp.ne.s32.totalorder %s86, %s88
      %p95 = scmp.eq.s32.totalorder %s31, 1
      %p96 = por %p94, %p95
      %p97 = scmp.ne.s32.totalorder %s88, %s89
      %p98 = scmp.eq.s32.totalorder %s31, 0
      %p99 = por %p97, %p98
      %p100 = scmp.ne.s32.totalorder %s88, %s89
      %p101 = scmp.eq.s32.totalorder %s32, 1
      %p102 = por %p100, %p101
      %p104 = scmp.ne.s32.totalorder %s89, %s103
      %p105 = scmp.eq.s32.totalorder %s32, 0
      %p106 = por %p104, %p105
      %s108 = sadd.s32 %s107, 1
      %p111 = scmp.eq.s32.totalorder %s26, 1
      %p112 = scmp.ne.s32.totalorder %s107, %s109
      %p113 = scmp.eq.s32.totalorder %s26, 0
      %p114 = por %p112, %p113
      %p115 = scmp.ne.s32.totalorder %s107, %s109
      %p116 = scmp.eq.s32.totalorder %s31, 1
      %p117 = por %p115, %p116
      %p118 = scmp.ne.s32.totalorder %s109, %s110
      %p119 = scmp.eq.s32.totalorder %s31, 0
      %p120 = por %p118, %p119
      %p121 = scmp.ne.s32.totalorder %s109, %s110
      %p122 = scmp.eq.s32.totalorder %s32, 1
      %p123 = por %p121, %p122
      %p125 = scmp.ne.s32.totalorder %s110, %s124
      %p126 = scmp.eq.s32.totalorder %s32, 0
      %p127 = por %p125, %p126
      %s129 = sadd.s32 %s128, 1
      %p132 = scmp.eq.s32.totalorder %s26, 1
      %p133 = scmp.ne.s32.totalorder %s128, %s130
      %p134 = scmp.eq.s32.totalorder %s26, 0
      %p135 = por %p133, %p134
      %p136 = scmp.ne.s32.totalorder %s128, %s130
      %p137 = scmp.eq.s32.totalorder %s31, 1
      %p138 = por %p136, %p137
      %p139 = scmp.ne.s32.totalorder %s130, %s131
      %p140 = scmp.eq.s32.totalorder %s31, 0
      %p141 = por %p139, %p140
      %p142 = scmp.ne.s32.totalorder %s130, %s131
      %p143 = scmp.eq.s32.totalorder %s32, 1
      %p144 = por %p142, %p143
      %p146 = scmp.ne.s32.totalorder %s131, %s145
      %p147 = scmp.eq.s32.totalorder %s32, 0
      %p148 = por %p146, %p147
      %s150 = sadd.s32 %s149, 1
      %p153 = scmp.eq.s32.totalorder %s26, 1
      %p154 = scmp.ne.s32.totalorder %s149, %s151
      %p155 = scmp.eq.s32.totalorder %s26, 0
      %p156 = por %p154, %p155
      %p157 = scmp.ne.s32.totalorder %s149, %s151
      %p158 = scmp.eq.s32.totalorder %s31, 1
      %p159 = por %p157, %p158
      %p160 = scmp.ne.s32.totalorder %s151, %s152
      %p161 = scmp.eq.s32.totalorder %s31, 0
      %p162 = por %p160, %p161
      %p163 = scmp.ne.s32.totalorder %s151, %s152
      %p164 = scmp.eq.s32.totalorder %s32, 1
      %p165 = por %p163, %p164
      %p167 = scmp.ne.s32.totalorder %s152, %s166
      %p168 = scmp.eq.s32.totalorder %s32, 0
      %p169 = por %p167, %p168
      %s171 = sadd.s32 %s170, 1
      %p174 = scmp.eq.s32.totalorder %s26, 1
      %p175 = scmp.ne.s32.totalorder %s170, %s172
      %p176 = scmp.eq.s32.totalorder %s26, 0
      %p177 = por %p175, %p176
      %p178 = scmp.ne.s32.totalorder %s170, %s172
      %p179 = scmp.eq.s32.totalorder %s31, 1
      %p180 = por %p178, %p179
      %p181 = scmp.ne.s32.totalorder %s172, %s173
      %p182 = scmp.eq.s32.totalorder %s31, 0
      %p183 = por %p181, %p182
      %p184 = scmp.ne.s32.totalorder %s172, %s173
      %p185 = scmp.eq.s32.totalorder %s32, 1
      %p186 = por %p184, %p185
      %p188 = scmp.ne.s32.totalorder %s173, %s187
      %p189 = scmp.eq.s32.totalorder %s32, 0
      %p190 = por %p188, %p189
      %s192 = sadd.s32 %s191, 1
      %p195 = scmp.eq.s32.totalorder %s26, 1
      %p196 = scmp.ne.s32.totalorder %s191, %s193
      %p197 = scmp.eq.s32.totalorder %s26, 0
      %p198 = por %p196, %p197
      %p199 = scmp.ne.s32.totalorder %s191, %s193
      %p200 = scmp.eq.s32.totalorder %s31, 1
      %p201 = por %p199, %p200
      %p202 = scmp.ne.s32.totalorder %s193, %s194
      %p203 = scmp.eq.s32.totalorder %s31, 0
      %p204 = por %p202, %p203
      %p205 = scmp.ne.s32.totalorder %s193, %s194
      %p206 = scmp.eq.s32.totalorder %s32, 1
      %p207 = por %p205, %p206
      %p209 = scmp.ne.s32.totalorder %s194, %s208
      %p210 = scmp.eq.s32.totalorder %s32, 0
      %p211 = por %p209, %p210
      %s213 = sadd.s32 %s212, 1
      %p216 = scmp.eq.s32.totalorder %s26, 1
      %p217 = scmp.ne.s32.totalorder %s212, %s214
      %p218 = scmp.eq.s32.totalorder %s26, 0
      %p219 = por %p217, %p218
      %p220 = scmp.ne.s32.totalorder %s212, %s214
      %p221 = scmp.eq.s32.totalorder %s31, 1
      %p222 = por %p220, %p221
      %p223 = scmp.ne.s32.totalorder %s214, %s215
      %p224 = scmp.eq.s32.totalorder %s31, 0
      %p225 = por %p223, %p224
      %p226 = scmp.ne.s32.totalorder %s214, %s215
      %p227 = scmp.eq.s32.totalorder %s32, 1
      %p228 = por %p226, %p227
      %p230 = scmp.ne.s32.totalorder %s215, %s229
      %p231 = scmp.eq.s32.totalorder %s32, 0
      %p232 = por %p230, %p231
      %s234 = sadd.s32 %s233, 1
      %p237 = scmp.eq.s32.totalorder %s26, 1
      %p238 = scmp.ne.s32.totalorder %s233, %s235
      %p239 = scmp.eq.s32.totalorder %s26, 0
      %p240 = por %p238, %p239
      %p241 = scmp.ne.s32.totalorder %s233, %s235
      %p242 = scmp.eq.s32.totalorder %s31, 1
      %p243 = por %p241, %p242
      %p244 = scmp.ne.s32.totalorder %s235, %s236
      %p245 = scmp.eq.s32.totalorder %s31, 0
      %p246 = por %p244, %p245
      %p247 = scmp.ne.s32.totalorder %s235, %s236
      %p248 = scmp.eq.s32.totalorder %s32, 1
      %p249 = por %p247, %p248
      %p251 = scmp.ne.s32.totalorder %s236, %s250
      %p252 = scmp.eq.s32.totalorder %s32, 0
      %p253 = por %p251, %p252
      %s255 = sadd.s32 %s254, 1
      %p258 = scmp.eq.s32.totalorder %s26, 1
      %p259 = scmp.ne.s32.totalorder %s254, %s256
      %p260 = scmp.eq.s32.totalorder %s26, 0
      %p261 = por %p259, %p260
      %p262 = scmp.ne.s32.totalorder %s254, %s256
      %p263 = scmp.eq.s32.totalorder %s31, 1
      %p264 = por %p262, %p263
      %p265 = scmp.ne.s32.totalorder %s256, %s257
      %p266 = scmp.eq.s32.totalorder %s31, 0
      %p267 = por %p265, %p266
      %p268 = scmp.ne.s32.totalorder %s256, %s257
      %p269 = scmp.eq.s32.totalorder %s32, 1
      %p270 = por %p268, %p269
      %p272 = scmp.ne.s32.totalorder %s257, %s271
      %p273 = scmp.eq.s32.totalorder %s32, 0
      %p274 = por %p272, %p273
      %s276 = sadd.s32 %s275, 1
      %p279 = scmp.eq.s32.totalorder %s26, 1
      %p280 = scmp.ne.s32.totalorder %s275, %s277
      %p281 = scmp.eq.s32.totalorder %s26, 0
      %p282 = por %p280, %p281
      %p283 = scmp.ne.s32.totalorder %s275, %s277
      %p284 = scmp.eq.s32.totalorder %s31, 1
      %p285 = por %p283, %p284
      %p286 = scmp.ne.s32.totalorder %s277, %s278
      %p287 = scmp.eq.s32.totalorder %s31, 0
      %p288 = por %p286, %p287
      %p289 = scmp.ne.s32.totalorder %s277, %s278
      %p290 = scmp.eq.s32.totalorder %s32, 1
      %p291 = por %p289, %p290
      %p293 = scmp.ne.s32.totalorder %s278, %s292
      %p294 = scmp.eq.s32.totalorder %s32, 0
      %p295 = por %p293, %p294
      %s296 = ssub.s32 %s26, %s33
      %p297 = scmp.eq.s32.totalorder %s296, 0
      %s299 = sadd.s32 %s298, 1
      %s300 = scalar_select %p297, %s298, %s299
      %p303 = pneg %p297
      %p304 = scmp.eq.s32.totalorder %s26, 1
      %p305 = por %p303, %p304
      %p306 = scmp.ne.s32.totalorder %s298, %s301
      %p307 = scmp.eq.s32.totalorder %s26, 0
      %p308 = por %p306, %p307
      %p309 = scmp.ne.s32.totalorder %s298, %s301
      %p310 = scmp.eq.s32.totalorder %s31, 1
      %p311 = por %p309, %p310
      %p312 = scmp.ne.s32.totalorder %s301, %s302
      %p313 = scmp.eq.s32.totalorder %s31, 0
      %p314 = por %p312, %p313
      %p315 = scmp.ne.s32.totalorder %s301, %s302
      %p316 = scmp.eq.s32.totalorder %s32, 1
      %p317 = por %p315, %p316
      %p319 = scmp.ne.s32.totalorder %s302, %s318
      %p320 = scmp.eq.s32.totalorder %s32, 0
      %p321 = por %p319, %p320
      %p322 = scmp.le.s32.totalorder 1, %s26
      %p323 = scmp.lt.s32.totalorder %s26, 3
      %p324 = pnand %p322, %p323
      %p325 = pneg %p324
      // Predicated region
      $region9: #{tpu_custom_call.1} parent=5 // pred_check
        _
      $region10: #{tpu_custom_call.1} parent=5 // pred_check_branch
        %327 = sbr.rel (%p324) target = $region12
      $region11: #{tpu_custom_call.1} parent=5 // pred_region
        %s328 = ssub.s32 %s26, 1
        // Predicated region
        $region13: #{tpu_custom_call.1} parent=11 // pred_check
          %p329 = pneg %p99
        $region14: #{tpu_custom_call.1} parent=11 // pred_check_branch
          %331 = sbr.rel (%p329) target = $region16
        $region15: #{tpu_custom_call.1} parent=11 // pred_region
          %s333 = ssub.s32 2048, 2048
          %334 = vsyncadd [#allocation6], %s333
          %s335 = sshll.u32 [#allocation5], 4
          %s336 = int_to_ptr.vmem [resolvable:$true] %s335
          %341 = dma.hbm_to_vmem [thread:$0]  %s2, 2048, %s336, [#allocation6], 256, 256, 16
        $region16: #{tpu_custom_call.1} parent=11 // pred_fallthru
          _
        // Predicated region
        $region17: #{tpu_custom_call.1} parent=11 // pred_check
          %p342 = pneg %p120
        $region18: #{tpu_custom_call.1} parent=11 // pred_check_branch
          %344 = sbr.rel (%p342) target = $region20
        $region19: #{tpu_custom_call.1} parent=11 // pred_region
          %s346 = ssub.s32 512, 512
          %347 = vsyncadd [#allocation6], %s346
          %s348 = sshll.u32 [#allocation7], 4
          %s349 = int_to_ptr.vmem [resolvable:$true] %s348
          %354 = dma.hbm_to_vmem [thread:$0]  %s3, 512, %s349, [#allocation6], 256, 256, 16
        $region20: #{tpu_custom_call.1} parent=11 // pred_fallthru
          _
        // Predicated region
        $region21: #{tpu_custom_call.1} parent=11 // pred_check
          %p355 = pneg %p141
        $region22: #{tpu_custom_call.1} parent=11 // pred_check_branch
          %357 = sbr.rel (%p355) target = $region24
        $region23: #{tpu_custom_call.1} parent=11 // pred_region
          _
        $region24: #{tpu_custom_call.1} parent=11 // pred_fallthru
          _
        // Predicated region
        $region25: #{tpu_custom_call.1} parent=11 // pred_check
          %p358 = pneg %p162
        $region26: #{tpu_custom_call.1} parent=11 // pred_check_branch
          %360 = sbr.rel (%p358) target = $region28
        $region27: #{tpu_custom_call.1} parent=11 // pred_region
          _
        $region28: #{tpu_custom_call.1} parent=11 // pred_fallthru
          _
        // Predicated region
        $region29: #{tpu_custom_call.1} parent=11 // pred_check
          %p361 = pneg %p183
        $region30: #{tpu_custom_call.1} parent=11 // pred_check_branch
          %363 = sbr.rel (%p361) target = $region32
        $region31: #{tpu_custom_call.1} parent=11 // pred_region
          %s365 = ssub.s32 128, 128
          %366 = vsyncadd [#allocation9], %s365
          %s368 = sshll.u32 [#allocation8], 4
          %s369 = int_to_ptr.vmem [resolvable:$true] %s368
          %371 = dma.hbm_to_vmem [thread:$0]  %s6, 128, %s369, [#allocation9]
        $region32: #{tpu_custom_call.1} parent=11 // pred_fallthru
          _
        // Predicated region
        $region33: #{tpu_custom_call.1} parent=11 // pred_check
          %p372 = pneg %p204
        $region34: #{tpu_custom_call.1} parent=11 // pred_check_branch
          %374 = sbr.rel (%p372) target = $region36
        $region35: #{tpu_custom_call.1} parent=11 // pred_region
          _
        $region36: #{tpu_custom_call.1} parent=11 // pred_fallthru
          _
        // Predicated region
        $region37: #{tpu_custom_call.1} parent=11 // pred_check
          %p375 = pneg %p225
        $region38: #{tpu_custom_call.1} parent=11 // pred_check_branch
          %377 = sbr.rel (%p375) target = $region40
        $region39: #{tpu_custom_call.1} parent=11 // pred_region
          _
        $region40: #{tpu_custom_call.1} parent=11 // pred_fallthru
          _
        // Predicated region
        $region41: #{tpu_custom_call.1} parent=11 // pred_check
          %p378 = pneg %p246
        $region42: #{tpu_custom_call.1} parent=11 // pred_check_branch
          %380 = sbr.rel (%p378) target = $region44
        $region43: #{tpu_custom_call.1} parent=11 // pred_region
          _
        $region44: #{tpu_custom_call.1} parent=11 // pred_fallthru
          _
        // Predicated region
        $region45: #{tpu_custom_call.1} parent=11 // pred_check
          %p381 = pneg %p267
        $region46: #{tpu_custom_call.1} parent=11 // pred_check_branch
          %383 = sbr.rel (%p381) target = $region48
        $region47: #{tpu_custom_call.1} parent=11 // pred_region
          _
        $region48: #{tpu_custom_call.1} parent=11 // pred_fallthru
          _
        // Predicated region
        $region49: #{tpu_custom_call.1} parent=11 // pred_check
          %p384 = pneg %p288
        $region50: #{tpu_custom_call.1} parent=11 // pred_check_branch
          %386 = sbr.rel (%p384) target = $region52
        $region51: #{tpu_custom_call.1} parent=11 // pred_region
          _
        $region52: #{tpu_custom_call.1} parent=11 // pred_fallthru
          _
      $region12: #{tpu_custom_call.1} parent=5 // pred_fallthru
        _
      %p387 = scmp.lt.s32.totalorder %s26, 2
      // Predicated region
      $region53: #{tpu_custom_call.1} parent=5 // pred_check
        %p388 = pneg %p387
      $region54: #{tpu_custom_call.1} parent=5 // pred_check_branch
        %390 = sbr.rel (%p388) target = $region56
      $region55: #{tpu_custom_call.1} parent=5 // pred_region
        // Predicated region
        $region57: #{tpu_custom_call.1} parent=55 // pred_check
          %p391 = pneg %p46
        $region58: #{tpu_custom_call.1} parent=55 // pred_check_branch
          %393 = sbr.rel (%p391) target = $region60
        $region59: #{tpu_custom_call.1} parent=55 // pred_region
          %s394 = sand.u32 %s36, 1
          %s395 = scalar_lea.sflag [#allocation3], %s394
          %s396 = sand.u32 %s36, 1
          %s397 = smul.addr %s396, 8
          %s398 = scalar_lea.vmem [#allocation2], %s397
          %s400 = ssub.s32 128, 128
          %401 = vsyncadd %s395, %s400
          %s402 = smul.addr %s26, 128
          %s403 = scalar_lea.hbm %s0, %s402
          %s405 = sshll.u32 %s398, 4
          %s406 = int_to_ptr.vmem [resolvable:$true] %s405
          %408 = dma.hbm_to_vmem [thread:$0]  %s403, 128, %s406, %s395
        $region60: #{tpu_custom_call.1} parent=55 // pred_fallthru
          _
        // Predicated region
        $region61: #{tpu_custom_call.1} parent=55 // pred_check
          %p409 = pneg %p72
        $region62: #{tpu_custom_call.1} parent=55 // pred_check_branch
          %411 = sbr.rel (%p409) target = $region64
        $region63: #{tpu_custom_call.1} parent=55 // pred_region
          %p412 = scmp.lt.s32.totalorder %s26, 1
          %s413 = scalar_select %p412, %s26, 1
          %s414 = smul.addr %s413, 2
          %s415 = smul.addr %s414, 8
          %s416 = scalar_lea.vmem %s1, %s415
        $region64: #{tpu_custom_call.1} parent=55 // pred_fallthru
          _
      $region56: #{tpu_custom_call.1} parent=5 // pred_fallthru
        _
      %p417 = scmp.le.s32.totalorder 1, %s26
      %p418 = scmp.lt.s32.totalorder %s26, 3
      %p419 = pnand %p417, %p418
      %p420 = pneg %p419
      // Predicated region
      $region65: #{tpu_custom_call.1} parent=5 // pred_check
        _
      $region66: #{tpu_custom_call.1} parent=5 // pred_check_branch
        %422 = sbr.rel (%p419) target = $region68
      $region67: #{tpu_custom_call.1} parent=5 // pred_region
        %s423 = ssub.s32 %s26, 1
        %s424 = sand.u32 %s39, 1
        %s425 = scalar_lea.sflag [#allocation3], %s424
        %s426 = sand.u32 %s39, 1
        %s427 = smul.addr %s426, 8
        %s428 = scalar_lea.vmem [#allocation2], %s427
        // Predicated region
        $region69: #{tpu_custom_call.1} parent=67 // pred_check
          %p429 = pneg %p52
        $region70: #{tpu_custom_call.1} parent=67 // pred_check_branch
          %431 = sbr.rel (%p429) target = $region72
        $region71: #{tpu_custom_call.1} parent=67 // pred_region
          %432 = dma.done %s425, 128
        $region72: #{tpu_custom_call.1} parent=67 // pred_fallthru
          _
        // Predicated region
        $region73: #{tpu_custom_call.1} parent=67 // pred_check
          %p433 = pneg %p99
        $region74: #{tpu_custom_call.1} parent=67 // pred_check_branch
          %435 = sbr.rel (%p433) target = $region76
        $region75: #{tpu_custom_call.1} parent=67 // pred_region
          %436 = dma.done [#allocation6], 2048
        $region76: #{tpu_custom_call.1} parent=67 // pred_fallthru
          _
        // Predicated region
        $region77: #{tpu_custom_call.1} parent=67 // pred_check
          %p437 = pneg %p120
        $region78: #{tpu_custom_call.1} parent=67 // pred_check_branch
          %439 = sbr.rel (%p437) target = $region80
        $region79: #{tpu_custom_call.1} parent=67 // pred_region
          %440 = dma.done [#allocation6], 512
        $region80: #{tpu_custom_call.1} parent=67 // pred_fallthru
          _
        // Predicated region
        $region81: #{tpu_custom_call.1} parent=67 // pred_check
          %p441 = pneg %p183
        $region82: #{tpu_custom_call.1} parent=67 // pred_check_branch
          %443 = sbr.rel (%p441) target = $region84
        $region83: #{tpu_custom_call.1} parent=67 // pred_region
          %444 = dma.done [#allocation9], 128
        $region84: #{tpu_custom_call.1} parent=67 // pred_fallthru
          _
        %s445 = sand.u32 %s39, 1
        %s446 = scalar_lea.sflag [#allocation3], %s445
        %s447 = sand.u32 %s39, 1
        %s448 = smul.addr %s447, 8
        %s449 = scalar_lea.vmem [#allocation2], %s448
        %p450 = pneg %p52
        %p451 = pneg %p49
        %p452 = scmp.lt.s32.totalorder %s31, 1
        %s453 = scalar_select %p452, %s31, 1
        %s454 = smul.addr %s453, 2
        %s455 = smul.addr %s454, 8
        %s456 = scalar_lea.vmem %s1, %s455
        %p457 = pneg %p78
        %p458 = pneg %p75
        %p459 = pneg %p99
        %p460 = pneg %p96
        %p461 = pneg %p120
        %p462 = pneg %p117
        %p463 = pneg %p141
        %p464 = pneg %p138
        %p465 = pneg %p162
        %p466 = pneg %p159
        %p467 = pneg %p183
        %p468 = pneg %p180
        %p469 = pneg %p204
        %p470 = pneg %p201
        %p471 = pneg %p225
        %p472 = pneg %p222
        %p473 = pneg %p246
        %p474 = pneg %p243
        %p475 = pneg %p267
        %p476 = pneg %p264
        %p477 = pneg %p288
        %p478 = pneg %p285
        %p479 = pneg %p314
        %p480 = pneg %p311
        %s481 = sand.u32 %s301, 1
        %s482 = scalar_lea.sflag [#allocation4], %s481
        %s483 = sand.u32 %s301, 1
        %s484 = smul.addr %s483, 16
        %s485 = scalar_lea.vmem [#allocation10], %s484
        %p486 = scmp.lt.s32.totalorder %s31, 1
        %s487 = scalar_select %p486, %s31, 1
        %s488 = smul.addr %s487, 2
        %s489 = smul.addr %s488, 8
        %s490 = scalar_lea.vmem %s1, %s489
        %v491 = vld [vmem:[#allocation7] sm:$0xff]
        %v492 = vld [vmem:[#allocation7 + $0x8] sm:$0xff]
        %v493 = vld [vmem:[#allocation7 + $0x10] sm:$0x1]
        %v494 = vld [vmem:[#allocation7 + $0x18] sm:$0x1]
        %v495 = vld [vmem:[%s428] sm:$0xff]
        %v496 = vld [vmem:[#allocation5] sm:$0xff]
        %v497 = vld [vmem:[#allocation5 + $0x8] sm:$0xff]
        %v498 = vld [vmem:[#allocation5 + $0x10] sm:$0xff]
        %v499 = vld [vmem:[#allocation5 + $0x18] sm:$0xff]
        %v500 = vld [vmem:[#allocation5 + $0x20] sm:$0xff]
        %v501 = vld [vmem:[#allocation5 + $0x28] sm:$0xff]
        %v502 = vld [vmem:[#allocation5 + $0x30] sm:$0xff]
        %v503 = vld [vmem:[#allocation5 + $0x38] sm:$0xff]
        %v504 = vld [vmem:[#allocation5 + $0x40] sm:$0xff]
        %v505 = vld [vmem:[#allocation5 + $0x48] sm:$0xff]
        %v506 = vld [vmem:[#allocation5 + $0x50] sm:$0xff]
        %v507 = vld [vmem:[#allocation5 + $0x58] sm:$0xff]
        %v508 = vld [vmem:[#allocation5 + $0x60] sm:$0xff]
        %v509 = vld [vmem:[#allocation5 + $0x68] sm:$0xff]
        %v510 = vld [vmem:[#allocation5 + $0x70] sm:$0xff]
        %v511 = vld [vmem:[#allocation5 + $0x78] sm:$0xff]
        %vm512 = vcmask 523264
        %v514 = vsel %vm512, %v495, 0
        %516 = vmatprep.subr.mxu0 0.0
        %517 = vmatpush1.msra.mxu0 0.0
        %518 = vmatprep.subr.mxu0 0.0
        %519 = vmatpush1.msra.mxu0 0.0
        %520 = vmatprep.subr.mxu0 0.0
        %521 = vmatpush1.msra.mxu0 0.0
        %522 = vmatprep.subr.mxu0 0.0
        %523 = vmatpush1.msra.mxu0 0.0
        %524 = vmatprep.subr.mxu0 0.0
        %525 = vmatpush1.msra.mxu0 0.0
        %526 = vmatprep.subr.mxu0 0.0
        %527 = vmatpush1.msra.mxu0 0.0
        %528 = vmatprep.subr.mxu0 0.0
        %529 = vmatpush1.msra.mxu0 0.0
        %530 = vmatprep.subr.mxu0 0.0
        %531 = vmatpush1.msra.mxu0 0.0
        %532 = vmatprep.subr.mxu0 %v511
        %533 = vmatpush1.msra.mxu0 %v510
        %534 = vmatprep.subr.mxu0 %v509
        %535 = vmatpush1.msra.mxu0 %v508
        %536 = vmatprep.subr.mxu0 %v507
        %537 = vmatpush1.msra.mxu0 %v506
        %538 = vmatprep.subr.mxu0 %v505
        %539 = vmatpush1.msra.mxu0 %v504
        %540 = vmatprep.subr.mxu0 %v503
        %541 = vmatpush1.msra.mxu0 %v502
        %542 = vmatprep.subr.mxu0 %v501
        %543 = vmatpush1.msra.mxu0 %v500
        %544 = vmatprep.subr.mxu0 %v499
        %545 = vmatpush1.msra.mxu0 %v498
        %546 = vmatprep.subr.mxu0 %v497
        %547 = vmatpush1.msra.mxu0 %v496
        %548 = vmatprep.subr.mxu0 0.0
        %549 = vmatpush2.msra.mxu0 0.0
        %550 = vmatprep.subr.mxu0 0.0
        %551 = vmatpush2.msra.mxu0 0.0
        %552 = vmatprep.subr.mxu0 0.0
        %553 = vmatpush2.msra.mxu0 0.0
        %554 = vmatprep.subr.mxu0 0.0
        %555 = vmatpush2.msra.mxu0 0.0
        %556 = vmatprep.subr.mxu0 0.0
        %557 = vmatpush2.msra.mxu0 0.0
        %558 = vmatprep.subr.mxu0 0.0
        %559 = vmatpush2.msra.mxu0 0.0
        %560 = vmatprep.subr.mxu0 0.0
        %561 = vmatpush2.msra.mxu0 0.0
        %562 = vmatprep.subr.mxu0 0.0
        %563 = vmatpush2.msra.mxu0 0.0
        %564 = vmatprep.subr.mxu0 0.0
        %565 = vmatpush2.msra.mxu0 0.0
        %566 = vmatprep.subr.mxu0 0.0
        %567 = vmatpush2.msra.mxu0 0.0
        %568 = vmatprep.subr.mxu0 0.0
        %569 = vmatpush2.msra.mxu0 0.0
        %570 = vmatprep.subr.mxu0 0.0
        %571 = vmatpush2.msra.mxu0 0.0
        %572 = vmatprep.subr.mxu0 0.0
        %573 = vmatpush2.msra.mxu0 0.0
        %574 = vmatprep.subr.mxu0 0.0
        %575 = vmatpush2.msra.mxu0 0.0
        %576 = vmatprep.subr.mxu0 0.0
        %577 = vmatpush2.msra.mxu0 0.0
        %578 = vmatprep.subr.mxu0 0.0
        %579 = vmatpush2.msra.mxu0 0.0
        %580 = vmatprep.mubr.f32.mxu0 0.0
        %581 = vmatmul.mubr.f32.gmra.mxu0 %v514
        %v582 = vpop.f32.mrf.mxu0
        %v583 = vadd.f32 0.0, %v582
        %v584 = vpop.f32.mrf.mxu0
        %v585 = vadd.f32 0.0, %v584
        %586 = vdwg.mxu0
        %v587 = vld [vmem:[%s490] sm:$0xff]
        %v588 = vld [vmem:[%s490 + $0x8] sm:$0xff]
        %v589 = vadd.f32 %v587, %v583
        %v590 = vadd.f32 %v588, %v585
        %v591 = vld [vmem:[%s4] sm:$0xff]
        %592 = vrot.lane.b32.xlu0 %v589, 17
        %v593 = vpop.permute.xlu0 %592
        %594 = vrot.lane.b32.xlu0 %v590, 17
        %v595 = vpop.permute.xlu0 %594
        %v596 = vlaneseq
        %v597 = vand.u32 %v596, 127
        %vm598 = vcmp.lt.s32.totalorder %v597, 17
        %v599 = vsel %vm598, %v593, %v595
        %v600 = vsel %vm598, %v595, %v593
        %v601 = vlaneseq
        %v602 = vshrl.u32 %v601, 7
        %v603 = vsub.s32 0, %v602
        %v604 = vrot.slane %v491, %v603
        %v605 = vlaneseq
        %v606 = vshrl.u32 %v605, 7
        %v607 = vsub.s32 0, %v606
        %v608 = vrot.slane %v492, %v607
        %v609 = vmul.f32 %v600, %v604
        %v610 = vmul.f32 %v599, %v608
        %611 = vrot.lane.b32.xlu0 %v589, 16
        %v612 = vpop.permute.xlu0 %611
        %613 = vrot.lane.b32.xlu0 %v590, 16
        %v614 = vpop.permute.xlu0 %613
        %vm615 = vcmp.lt.s32.totalorder %v597, 16
        %v616 = vsel %vm615, %v612, %v614
        %v617 = vsel %vm615, %v614, %v612
        %v618 = vlaneseq
        %v619 = vshrl.u32 %v618, 7
        %v620 = vsub.s32 1, %v619
        %v621 = vrot.slane %v491, %v620
        %v622 = vlaneseq
        %v623 = vshrl.u32 %v622, 7
        %v624 = vsub.s32 1, %v623
        %v625 = vrot.slane %v492, %v624
        %v626 = vmul.f32 %v617, %v621
        %v627 = vmul.f32 %v616, %v625
        %628 = vrot.lane.b32.xlu0 %v589, 15
        %v629 = vpop.permute.xlu0 %628
        %630 = vrot.lane.b32.xlu0 %v590, 15
        %v631 = vpop.permute.xlu0 %630
        %vm632 = vcmp.lt.s32.totalorder %v597, 15
        %v633 = vsel %vm632, %v629, %v631
        %v634 = vsel %vm632, %v631, %v629
        %v635 = vlaneseq
        %v636 = vshrl.u32 %v635, 7
        %v637 = vsub.s32 2, %v636
        %v638 = vrot.slane %v491, %v637
        %v639 = vlaneseq
        %v640 = vshrl.u32 %v639, 7
        %v641 = vsub.s32 2, %v640
        %v642 = vrot.slane %v492, %v641
        %v643 = vmul.f32 %v634, %v638
        %v644 = vmul.f32 %v633, %v642
        %645 = vrot.lane.b32.xlu0 %v589, 1
        %v646 = vpop.permute.xlu0 %645
        %647 = vrot.lane.b32.xlu0 %v590, 1
        %v648 = vpop.permute.xlu0 %647
        %vm649 = vcmp.lt.s32.totalorder %v597, 1
        %v650 = vsel %vm649, %v646, %v648
        %v651 = vsel %vm649, %v648, %v646
        %v652 = vlaneseq
        %v653 = vshrl.u32 %v652, 7
        %v654 = vsub.s32 3, %v653
        %v655 = vrot.slane %v491, %v654
        %v656 = vlaneseq
        %v657 = vshrl.u32 %v656, 7
        %v658 = vsub.s32 3, %v657
        %v659 = vrot.slane %v492, %v658
        %v660 = vmul.f32 %v651, %v655
        %v661 = vmul.f32 %v650, %v659
        %662 = vrot.lane.b32.xlu0 %v589, 127
        %v663 = vpop.permute.xlu0 %662
        %664 = vrot.lane.b32.xlu0 %v590, 127
        %v665 = vpop.permute.xlu0 %664
        %vm666 = vcmp.lt.s32.totalorder %v597, 127
        %v667 = vsel %vm666, %v663, %v665
        %v668 = vsel %vm666, %v665, %v663
        %v669 = vlaneseq
        %v670 = vshrl.u32 %v669, 7
        %v671 = vsub.s32 5, %v670
        %v672 = vrot.slane %v491, %v671
        %v673 = vlaneseq
        %v674 = vshrl.u32 %v673, 7
        %v675 = vsub.s32 5, %v674
        %v676 = vrot.slane %v492, %v675
        %v677 = vmul.f32 %v667, %v672
        %v678 = vmul.f32 %v668, %v676
        %679 = vrot.lane.b32.xlu0 %v589, 113
        %v680 = vpop.permute.xlu0 %679
        %681 = vrot.lane.b32.xlu0 %v590, 113
        %v682 = vpop.permute.xlu0 %681
        %vm683 = vcmp.lt.s32.totalorder %v597, 113
        %v684 = vsel %vm683, %v680, %v682
        %v685 = vsel %vm683, %v682, %v680
        %v686 = vlaneseq
        %v687 = vshrl.u32 %v686, 7
        %v688 = vsub.s32 6, %v687
        %v689 = vrot.slane %v491, %v688
        %v690 = vlaneseq
        %v691 = vshrl.u32 %v690, 7
        %v692 = vsub.s32 6, %v691
        %v693 = vrot.slane %v492, %v692
        %v694 = vmul.f32 %v684, %v689
        %v695 = vmul.f32 %v685, %v693
        %696 = vrot.lane.b32.xlu0 %v589, 112
        %v697 = vpop.permute.xlu0 %696
        %698 = vrot.lane.b32.xlu0 %v590, 112
        %v699 = vpop.permute.xlu0 %698
        %vm700 = vcmp.lt.s32.totalorder %v597, 112
        %v701 = vsel %vm700, %v697, %v699
        %v702 = vsel %vm700, %v699, %v697
        %v703 = vlaneseq
        %v704 = vshrl.u32 %v703, 7
        %v705 = vsub.s32 7, %v704
        %v706 = vrot.slane %v491, %v705
        %v707 = vlaneseq
        %v708 = vshrl.u32 %v707, 7
        %v709 = vsub.s32 7, %v708
        %v710 = vrot.slane %v492, %v709
        %v711 = vmul.f32 %v701, %v706
        %v712 = vmul.f32 %v702, %v710
        %713 = vrot.lane.b32.xlu0 %v589, 111
        %v714 = vpop.permute.xlu0 %713
        %715 = vrot.lane.b32.xlu0 %v590, 111
        %v716 = vpop.permute.xlu0 %715
        %vm717 = vcmp.lt.s32.totalorder %v597, 111
        %v718 = vsel %vm717, %v714, %v716
        %v719 = vsel %vm717, %v716, %v714
        %v720 = vlaneseq
        %v721 = vshrl.u32 %v720, 7
        %v722 = vsub.s32 0, %v721
        %v723 = vrot.slane %v493, %v722
        %v724 = vlaneseq
        %v725 = vshrl.u32 %v724, 7
        %v726 = vsub.s32 0, %v725
        %v727 = vrot.slane %v494, %v726
        %v728 = vmul.f32 %v718, %v723
        %v729 = vmul.f32 %v719, %v727
        %vm730 = vcmask 588800
        %v732 = vsel %vm730, %v591, 0
        %734 = vmatprep.subr.mxu0 0.0
        %735 = vmatpush1.msra.mxu0 0.0
        %736 = vmatprep.subr.mxu0 0.0
        %737 = vmatpush1.msra.mxu0 0.0
        %738 = vmatprep.subr.mxu0 0.0
        %739 = vmatpush1.msra.mxu0 0.0
        %740 = vmatprep.subr.mxu0 0.0
        %741 = vmatpush1.msra.mxu0 0.0
        %742 = vmatprep.subr.mxu0 0.0
        %743 = vmatpush1.msra.mxu0 0.0
        %744 = vmatprep.subr.mxu0 0.0
        %745 = vmatpush1.msra.mxu0 0.0
        %746 = vmatprep.subr.mxu0 0.0
        %747 = vmatpush1.msra.mxu0 0.0
        %748 = vmatprep.subr.mxu0 %v729
        %749 = vmatpush1.msra.mxu0 %v728
        %750 = vmatprep.subr.mxu0 %v712
        %751 = vmatpush1.msra.mxu0 %v711
        %752 = vmatprep.subr.mxu0 %v695
        %753 = vmatpush1.msra.mxu0 %v694
        %754 = vmatprep.subr.mxu0 %v678
        %755 = vmatpush1.msra.mxu0 %v677
        %756 = vmatprep.subr.mxu0 %v590
        %757 = vmatpush1.msra.mxu0 %v589
        %758 = vmatprep.subr.mxu0 %v661
        %759 = vmatpush1.msra.mxu0 %v660
        %760 = vmatprep.subr.mxu0 %v644
        %761 = vmatpush1.msra.mxu0 %v643
        %762 = vmatprep.subr.mxu0 %v627
        %763 = vmatpush1.msra.mxu0 %v626
        %764 = vmatprep.subr.mxu0 %v610
        %765 = vmatpush1.msra.mxu0 %v609
        %766 = vmatprep.subr.mxu0 0.0
        %767 = vmatpush2.msra.mxu0 0.0
        %768 = vmatprep.subr.mxu0 0.0
        %769 = vmatpush2.msra.mxu0 0.0
        %770 = vmatprep.subr.mxu0 0.0
        %771 = vmatpush2.msra.mxu0 0.0
        %772 = vmatprep.subr.mxu0 0.0
        %773 = vmatpush2.msra.mxu0 0.0
        %774 = vmatprep.subr.mxu0 0.0
        %775 = vmatpush2.msra.mxu0 0.0
        %776 = vmatprep.subr.mxu0 0.0
        %777 = vmatpush2.msra.mxu0 0.0
        %778 = vmatprep.subr.mxu0 0.0
        %779 = vmatpush2.msra.mxu0 0.0
        %780 = vmatprep.subr.mxu0 0.0
        %781 = vmatpush2.msra.mxu0 0.0
        %782 = vmatprep.subr.mxu0 0.0
        %783 = vmatpush2.msra.mxu0 0.0
        %784 = vmatprep.subr.mxu0 0.0
        %785 = vmatpush2.msra.mxu0 0.0
        %786 = vmatprep.subr.mxu0 0.0
        %787 = vmatpush2.msra.mxu0 0.0
        %788 = vmatprep.subr.mxu0 0.0
        %789 = vmatpush2.msra.mxu0 0.0
        %790 = vmatprep.subr.mxu0 0.0
        %791 = vmatpush2.msra.mxu0 0.0
        %792 = vmatprep.subr.mxu0 0.0
        %793 = vmatpush2.msra.mxu0 0.0
        %794 = vmatprep.subr.mxu0 0.0
        %795 = vmatpush2.msra.mxu0 0.0
        %796 = vmatprep.subr.mxu0 0.0
        %797 = vmatpush2.msra.mxu0 0.0
        %798 = vmatprep.mubr.f32.mxu0 0.0
        %799 = vmatmul.mubr.f32.gmra.mxu0 %v732
        %v800 = vpop.f32.mrf.mxu0
        %v801 = vadd.f32 0.0, %v800
        %v802 = vpop.f32.mrf.mxu0
        %v803 = vadd.f32 0.0, %v802
        %804 = vdwg.mxu0
        %v805 = vld [vmem:[%s7] sm:$0xff]
        %807 = vset.pattern.permute.xlu0 0
        %808 = vperm.xlu0 %807, %v805
        %v809 = vpop.permute.xlu0 %808
        %v811 = vmul.f32 %v801, %v809
        %v812 = vmul.f32 %v803, %v809
        %v813 = vld [vmem:[%s8] sm:$0xff]
        %815 = vset.pattern.permute.xlu0 0
        %816 = vperm.xlu0 %815, %v813
        %v817 = vpop.permute.xlu0 %816
        %v819 = vadd.f32 %v811, %v817
        %v820 = vadd.f32 %v812, %v817
        %v821 = vmax.f32 %v819, 0.0
        %v822 = vmax.f32 %v820, 0.0
        %v823 = vld [vmem:[%s5] sm:$0xff]
        %824 = vrot.lane.b32.xlu0 %v821, 17
        %v825 = vpop.permute.xlu0 %824
        %826 = vrot.lane.b32.xlu0 %v822, 17
        %v827 = vpop.permute.xlu0 %826
        %v828 = vsel %vm598, %v825, %v827
        %v829 = vsel %vm598, %v827, %v825
        %v830 = vmul.f32 %v829, %v604
        %v831 = vmul.f32 %v828, %v608
        %832 = vrot.lane.b32.xlu0 %v821, 16
        %v833 = vpop.permute.xlu0 %832
        %834 = vrot.lane.b32.xlu0 %v822, 16
        %v835 = vpop.permute.xlu0 %834
        %v836 = vsel %vm615, %v833, %v835
        %v837 = vsel %vm615, %v835, %v833
        %v838 = vmul.f32 %v837, %v621
        %v839 = vmul.f32 %v836, %v625
        %840 = vrot.lane.b32.xlu0 %v821, 15
        %v841 = vpop.permute.xlu0 %840
        %842 = vrot.lane.b32.xlu0 %v822, 15
        %v843 = vpop.permute.xlu0 %842
        %v844 = vsel %vm632, %v841, %v843
        %v845 = vsel %vm632, %v843, %v841
        %v846 = vmul.f32 %v845, %v638
        %v847 = vmul.f32 %v844, %v642
        %848 = vrot.lane.b32.xlu0 %v821, 1
        %v849 = vpop.permute.xlu0 %848
        %850 = vrot.lane.b32.xlu0 %v822, 1
        %v851 = vpop.permute.xlu0 %850
        %v852 = vsel %vm649, %v849, %v851
        %v853 = vsel %vm649, %v851, %v849
        %v854 = vmul.f32 %v853, %v655
        %v855 = vmul.f32 %v852, %v659
        %856 = vrot.lane.b32.xlu0 %v821, 127
        %v857 = vpop.permute.xlu0 %856
        %858 = vrot.lane.b32.xlu0 %v822, 127
        %v859 = vpop.permute.xlu0 %858
        %v860 = vsel %vm666, %v857, %v859
        %v861 = vsel %vm666, %v859, %v857
        %v862 = vmul.f32 %v860, %v672
        %v863 = vmul.f32 %v861, %v676
        %864 = vrot.lane.b32.xlu0 %v821, 113
        %v865 = vpop.permute.xlu0 %864
        %866 = vrot.lane.b32.xlu0 %v822, 113
        %v867 = vpop.permute.xlu0 %866
        %v868 = vsel %vm683, %v865, %v867
        %v869 = vsel %vm683, %v867, %v865
        %v870 = vmul.f32 %v868, %v689
        %v871 = vmul.f32 %v869, %v693
        %872 = vrot.lane.b32.xlu0 %v821, 112
        %v873 = vpop.permute.xlu0 %872
        %874 = vrot.lane.b32.xlu0 %v822, 112
        %v875 = vpop.permute.xlu0 %874
        %v876 = vsel %vm700, %v873, %v875
        %v877 = vsel %vm700, %v875, %v873
        %v878 = vmul.f32 %v876, %v706
        %v879 = vmul.f32 %v877, %v710
        %880 = vrot.lane.b32.xlu0 %v821, 111
        %v881 = vpop.permute.xlu0 %880
        %882 = vrot.lane.b32.xlu0 %v822, 111
        %v883 = vpop.permute.xlu0 %882
        %v884 = vsel %vm717, %v881, %v883
        %v885 = vsel %vm717, %v883, %v881
        %v886 = vmul.f32 %v884, %v723
        %v887 = vmul.f32 %v885, %v727
        %v889 = vsel %vm730, %v823, 0
        %891 = vmatprep.subr.mxu0 0.0
        %892 = vmatpush1.msra.mxu0 0.0
        %893 = vmatprep.subr.mxu0 0.0
        %894 = vmatpush1.msra.mxu0 0.0
        %895 = vmatprep.subr.mxu0 0.0
        %896 = vmatpush1.msra.mxu0 0.0
        %897 = vmatprep.subr.mxu0 0.0
        %898 = vmatpush1.msra.mxu0 0.0
        %899 = vmatprep.subr.mxu0 0.0
        %900 = vmatpush1.msra.mxu0 0.0
        %901 = vmatprep.subr.mxu0 0.0
        %902 = vmatpush1.msra.mxu0 0.0
        %903 = vmatprep.subr.mxu0 0.0
        %904 = vmatpush1.msra.mxu0 0.0
        %905 = vmatprep.subr.mxu0 %v887
        %906 = vmatpush1.msra.mxu0 %v886
        %907 = vmatprep.subr.mxu0 %v879
        %908 = vmatpush1.msra.mxu0 %v878
        %909 = vmatprep.subr.mxu0 %v871
        %910 = vmatpush1.msra.mxu0 %v870
        %911 = vmatprep.subr.mxu0 %v863
        %912 = vmatpush1.msra.mxu0 %v862
        %913 = vmatprep.subr.mxu0 %v822
        %914 = vmatpush1.msra.mxu0 %v821
        %915 = vmatprep.subr.mxu0 %v855
        %916 = vmatpush1.msra.mxu0 %v854
        %917 = vmatprep.subr.mxu0 %v847
        %918 = vmatpush1.msra.mxu0 %v846
        %919 = vmatprep.subr.mxu0 %v839
        %920 = vmatpush1.msra.mxu0 %v838
        %921 = vmatprep.subr.mxu0 %v831
        %922 = vmatpush1.msra.mxu0 %v830
        %923 = vmatprep.subr.mxu0 0.0
        %924 = vmatpush2.msra.mxu0 0.0
        %925 = vmatprep.subr.mxu0 0.0
        %926 = vmatpush2.msra.mxu0 0.0
        %927 = vmatprep.subr.mxu0 0.0
        %928 = vmatpush2.msra.mxu0 0.0
        %929 = vmatprep.subr.mxu0 0.0
        %930 = vmatpush2.msra.mxu0 0.0
        %931 = vmatprep.subr.mxu0 0.0
        %932 = vmatpush2.msra.mxu0 0.0
        %933 = vmatprep.subr.mxu0 0.0
        %934 = vmatpush2.msra.mxu0 0.0
        %935 = vmatprep.subr.mxu0 0.0
        %936 = vmatpush2.msra.mxu0 0.0
        %937 = vmatprep.subr.mxu0 0.0
        %938 = vmatpush2.msra.mxu0 0.0
        %939 = vmatprep.subr.mxu0 0.0
        %940 = vmatpush2.msra.mxu0 0.0
        %941 = vmatprep.subr.mxu0 0.0
        %942 = vmatpush2.msra.mxu0 0.0
        %943 = vmatprep.subr.mxu0 0.0
        %944 = vmatpush2.msra.mxu0 0.0
        %945 = vmatprep.subr.mxu0 0.0
        %946 = vmatpush2.msra.mxu0 0.0
        %947 = vmatprep.subr.mxu0 0.0
        %948 = vmatpush2.msra.mxu0 0.0
        %949 = vmatprep.subr.mxu0 0.0
        %950 = vmatpush2.msra.mxu0 0.0
        %951 = vmatprep.subr.mxu0 0.0
        %952 = vmatpush2.msra.mxu0 0.0
        %953 = vmatprep.subr.mxu0 0.0
        %954 = vmatpush2.msra.mxu0 0.0
        %955 = vmatprep.mubr.f32.mxu0 0.0
        %956 = vmatmul.mubr.f32.gmra.mxu0 %v889
        %v957 = vpop.f32.mrf.mxu0
        %v958 = vadd.f32 0.0, %v957
        %v959 = vpop.f32.mrf.mxu0
        %v960 = vadd.f32 0.0, %v959
        %961 = vdwg.mxu0
        %v962 = vld [vmem:[%s9] sm:$0xff]
        %964 = vset.pattern.permute.xlu0 0
        %965 = vperm.xlu0 %964, %v962
        %v966 = vpop.permute.xlu0 %965
        %v968 = vmul.f32 %v958, %v966
        %v969 = vmul.f32 %v960, %v966
        %v970 = vld [vmem:[%s10] sm:$0xff]
        %972 = vset.pattern.permute.xlu0 0
        %973 = vperm.xlu0 %972, %v970
        %v974 = vpop.permute.xlu0 %973
        %v976 = vadd.f32 %v968, %v974
        %v977 = vadd.f32 %v969, %v974
        %v978 = vld [vmem:[#allocation8] sm:$0xff]
        %v979 = vld [vmem:[%s11] sm:$0xff]
        %981 = vset.pattern.permute.xlu0 0
        %982 = vperm.xlu0 %981, %v979
        %v983 = vpop.permute.xlu0 %982
        %vm985 = vcmask 64512
        %v987 = vsel %vm985, %v978, 0
        %989 = vmatprep.subr.mxu0 0.0
        %990 = vmatpush1.msra.mxu0 0.0
        %991 = vmatprep.subr.mxu0 0.0
        %992 = vmatpush1.msra.mxu0 0.0
        %993 = vmatprep.subr.mxu0 0.0
        %994 = vmatpush1.msra.mxu0 0.0
        %995 = vmatprep.subr.mxu0 0.0
        %996 = vmatpush1.msra.mxu0 0.0
        %997 = vmatprep.subr.mxu0 0.0
        %998 = vmatpush1.msra.mxu0 0.0
        %999 = vmatprep.subr.mxu0 0.0
        %1000 = vmatpush1.msra.mxu0 0.0
        %1001 = vmatprep.subr.mxu0 0.0
        %1002 = vmatpush1.msra.mxu0 0.0
        %1003 = vmatprep.subr.mxu0 0.0
        %1004 = vmatpush1.msra.mxu0 0.0
        %1005 = vmatprep.subr.mxu0 0.0
        %1006 = vmatpush1.msra.mxu0 0.0
        %1007 = vmatprep.subr.mxu0 0.0
        %1008 = vmatpush1.msra.mxu0 0.0
        %1009 = vmatprep.subr.mxu0 0.0
        %1010 = vmatpush1.msra.mxu0 0.0
        %1011 = vmatprep.subr.mxu0 0.0
        %1012 = vmatpush1.msra.mxu0 0.0
        %1013 = vmatprep.subr.mxu0 0.0
        %1014 = vmatpush1.msra.mxu0 0.0
        %1015 = vmatprep.subr.mxu0 0.0
        %1016 = vmatpush1.msra.mxu0 0.0
        %1017 = vmatprep.subr.mxu0 0.0
        %1018 = vmatpush1.msra.mxu0 0.0
        %1019 = vmatprep.subr.mxu0 %v590
        %1020 = vmatpush1.msra.mxu0 %v589
        %1021 = vmatprep.subr.mxu0 0.0
        %1022 = vmatpush2.msra.mxu0 0.0
        %1023 = vmatprep.subr.mxu0 0.0
        %1024 = vmatpush2.msra.mxu0 0.0
        %1025 = vmatprep.subr.mxu0 0.0
        %1026 = vmatpush2.msra.mxu0 0.0
        %1027 = vmatprep.subr.mxu0 0.0
        %1028 = vmatpush2.msra.mxu0 0.0
        %1029 = vmatprep.subr.mxu0 0.0
        %1030 = vmatpush2.msra.mxu0 0.0
        %1031 = vmatprep.subr.mxu0 0.0
        %1032 = vmatpush2.msra.mxu0 0.0
        %1033 = vmatprep.subr.mxu0 0.0
        %1034 = vmatpush2.msra.mxu0 0.0
        %1035 = vmatprep.subr.mxu0 0.0
        %1036 = vmatpush2.msra.mxu0 0.0
        %1037 = vmatprep.subr.mxu0 0.0
        %1038 = vmatpush2.msra.mxu0 0.0
        %1039 = vmatprep.subr.mxu0 0.0
        %1040 = vmatpush2.msra.mxu0 0.0
        %1041 = vmatprep.subr.mxu0 0.0
        %1042 = vmatpush2.msra.mxu0 0.0
        %1043 = vmatprep.subr.mxu0 0.0
        %1044 = vmatpush2.msra.mxu0 0.0
        %1045 = vmatprep.subr.mxu0 0.0
        %1046 = vmatpush2.msra.mxu0 0.0
        %1047 = vmatprep.subr.mxu0 0.0
        %1048 = vmatpush2.msra.mxu0 0.0
        %1049 = vmatprep.subr.mxu0 0.0
        %1050 = vmatpush2.msra.mxu0 0.0
        %1051 = vmatprep.subr.mxu0 0.0
        %1052 = vmatpush2.msra.mxu0 0.0
        %1053 = vmatprep.mubr.f32.mxu0 0.0
        %1054 = vmatmul.mubr.f32.gmra.mxu0 %v987
        %v1055 = vpop.f32.mrf.mxu0
        %v1056 = vadd.f32 %v983, %v1055
        %v1057 = vpop.f32.mrf.mxu0
        %v1058 = vadd.f32 %v983, %v1057
        %1059 = vdwg.mxu0
        %v1060 = vadd.f32 %v976, %v1056
        %v1061 = vadd.f32 %v977, %v1058
        %v1062 = vmax.f32 %v1060, 0.0
        %v1063 = vmax.f32 %v1061, 0.0
        %1064 = vst [vmem:[%s485] sm:$0xff] %v1062
        %1065 = vst [vmem:[%s485 + $0x8] sm:$0xff] %v1063
        %s1066 = sand.u32 %s301, 1
        %s1067 = scalar_lea.sflag [#allocation4], %s1066
        %s1068 = sand.u32 %s301, 1
        %s1069 = smul.addr %s1068, 16
        %s1070 = scalar_lea.vmem [#allocation10], %s1069
        // Predicated region
        $region85: #{tpu_custom_call.1} parent=67 // pred_check
          %p1071 = pneg %p311
        $region86: #{tpu_custom_call.1} parent=67 // pred_check_branch
          %1073 = sbr.rel (%p1071) target = $region88
        $region87: #{tpu_custom_call.1} parent=67 // pred_region
          %s1075 = ssub.s32 256, 256
          %1076 = vsyncadd %s1067, %s1075
          %s1077 = smul.addr %s31, 2
          %s1078 = smul.addr %s1077, 128
          %s1079 = scalar_lea.hbm %s12, %s1078
          %s1081 = sshll.u32 %s1070, 4
          %s1082 = int_to_ptr.vmem [resolvable:$true] %s1081
          %1084 = dma.vmem_to_hbm [thread:$0]  %s1082, 256, %s1079, %s1067
        $region88: #{tpu_custom_call.1} parent=67 // pred_fallthru
          _
      $region68: #{tpu_custom_call.1} parent=5 // pred_fallthru
        _
      %p1085 = scmp.le.s32.totalorder 2, %s26
      // Predicated region
      $region89: #{tpu_custom_call.1} parent=5 // pred_check
        %p1086 = pneg %p1085
      $region90: #{tpu_custom_call.1} parent=5 // pred_check_branch
        %1088 = sbr.rel (%p1086) target = $region92
      $region91: #{tpu_custom_call.1} parent=5 // pred_region
        %s1089 = ssub.s32 %s26, 2
        // Predicated region
        $region93: #{tpu_custom_call.1} parent=91 // pred_check
          %p1090 = pneg %p317
        $region94: #{tpu_custom_call.1} parent=91 // pred_check_branch
          %1092 = sbr.rel (%p1090) target = $region96
        $region95: #{tpu_custom_call.1} parent=91 // pred_region
          %s1093 = sand.u32 %s302, 1
          %s1094 = scalar_lea.sflag [#allocation4], %s1093
          %s1095 = sand.u32 %s302, 1
          %s1096 = smul.addr %s1095, 16
          %s1097 = scalar_lea.vmem [#allocation10], %s1096
          %1098 = dma.done %s1094, 256
        $region96: #{tpu_custom_call.1} parent=91 // pred_fallthru
          _
      $region92: #{tpu_custom_call.1} parent=5 // pred_fallthru
        _
    $region6: #{tpu_custom_call.1} parent=1 // loop_footer
      %s30 = sadd.s32 1, %s26
    $region7: #{tpu_custom_call.1} parent=1 // loop_footer_branch
      %25 = sbr.rel target = $region3
    $region8: #{tpu_custom_call.1} parent=1 // loop_exit
      _
    %1099 = vsyncpa [#allocation3], 1
    %s1100 = scalar_lea.sflag [#allocation3], 1
    %1101 = vsyncpa %s1100, 1
    %1102 = vsyncpa [#allocation6], 1
    %1103 = vsyncpa [#allocation9], 1
    %1104 = vsyncpa [#allocation4], 1
    %s1105 = scalar_lea.sflag [#allocation4], 1
    %1106 = vsyncpa %s1105, 1

</llo_original>
